<compile_context>
chip_gen: v7x
topology: tpu7x:2x2x1
jax: 0.10.0
libtpu: 0.0.40
codegen_flags: <defaults>
</compile_context>

<pallas_src>
import functools

import jax
import jax.numpy as jnp
from jax.experimental import pallas as pl
from jax.experimental.pallas import tpu as pltpu


# ----------------------------- tiling helpers -----------------------------

_TM = 256   # row-tile target (sublane multiple)
_TN = 512   # col-tile target (lane multiple)


def _ceil_to(v, m):
    return (v + m - 1) // m * m


def _pad_axis(a, axis, size):
    if a.shape[axis] == size:
        return a
    widths = [(0, 0)] * a.ndim
    widths[axis] = (0, size - a.shape[axis])
    return jnp.pad(a, widths)


def _grid_tiles(M, N):
    tm = M if M <= _TM else _TM
    tn = N if N <= _TN else _TN
    return tm, tn, _ceil_to(M, tm), _ceil_to(N, tn)


def _gelu(y):
    # exact GELU (PyTorch nn.GELU default), fp32
    return 0.5 * y * (1.0 + jax.lax.erf(y * 0.7071067811865476))


# ----------------------------- Pallas kernels -----------------------------


def _matmul_bias_kernel(x_ref, w_ref, b_ref, o_ref, *, activation):
    # x, w in bf16; MXU accumulates fp32.
    y = jnp.dot(x_ref[...], w_ref[...], preferred_element_type=jnp.float32) + b_ref[...]
    if activation == "gelu":
        y = _gelu(y)
    o_ref[...] = y.astype(o_ref.dtype)


def _ln_matmul_kernel(x_ref, g_ref, bt_ref, w_ref, b_ref, o_ref, *, activation, eps):
    # fused LayerNorm prologue (fp32) + bf16 matmul (+ optional GELU epilogue).
    x = x_ref[...].astype(jnp.float32)
    mu = jnp.mean(x, axis=-1, keepdims=True)
    xc = x - mu
    var = jnp.mean(xc * xc, axis=-1, keepdims=True)
    xn = xc * jax.lax.rsqrt(var + eps)
    xn = xn * g_ref[...] + bt_ref[...]
    y = jnp.dot(xn.astype(jnp.bfloat16), w_ref[...],
                preferred_element_type=jnp.float32) + b_ref[...]
    if activation == "gelu":
        y = _gelu(y)
    o_ref[...] = y.astype(o_ref.dtype)


def _matmul_scale_residual_kernel(h_ref, w_ref, b_ref, r_ref, ls_ref, o_ref):
    # fused matmul + bias + LayerScale + residual epilogue: out = r + ls * (h @ w + b)
    y = jnp.dot(h_ref[...], w_ref[...], preferred_element_type=jnp.float32) + b_ref[...]
    o_ref[...] = (r_ref[...].astype(jnp.float32) + ls_ref[...] * y).astype(o_ref.dtype)


def _layernorm_kernel(x_ref, g_ref, b_ref, o_ref, *, eps):
    x = x_ref[...].astype(jnp.float32)
    mu = jnp.mean(x, axis=-1, keepdims=True)
    xc = x - mu
    var = jnp.mean(xc * xc, axis=-1, keepdims=True)
    y = xc * jax.lax.rsqrt(var + eps)
    o_ref[...] = (y * g_ref[...] + b_ref[...]).astype(o_ref.dtype)


def _attn_kernel(qkv_ref, o_ref, *, num_heads, dh, scale):
    # one batch element per grid step; heads unrolled statically.
    qkv = qkv_ref[0]                     # (T, 3D) bf16
    D = num_heads * dh
    outs = []
    for h in range(num_heads):
        q = qkv[:, h * dh:(h + 1) * dh]
        k = qkv[:, D + h * dh:D + (h + 1) * dh]
        v = qkv[:, 2 * D + h * dh:2 * D + (h + 1) * dh]
        # QK^T without materializing K^T (contract last dims of both).
        s = jax.lax.dot_general(q, k, (((1,), (1,)), ((), ())),
                                preferred_element_type=jnp.float32) * scale
        m = jnp.max(s, axis=-1, keepdims=True)
        p = jnp.exp(s - m)
        denom = jnp.sum(p, axis=-1, keepdims=True)
        p = p * pl.reciprocal(denom, approx=True)
        outs.append(jnp.dot(p.astype(jnp.bfloat16), v, preferred_element_type=jnp.float32))
    # single lane-dense store of the full (T, D) block in (B, T, D) layout.
    o_ref[0] = jnp.concatenate(outs, axis=-1).astype(o_ref.dtype)


# ----------------------------- kernel wrappers -----------------------------

_PARALLEL2 = pltpu.CompilerParams(dimension_semantics=("parallel", "parallel"))
_PARALLEL1 = pltpu.CompilerParams(dimension_semantics=("parallel",))


def linear(x, w, b, *, activation="none", out_dtype=jnp.bfloat16):
    """x: (M, K) bf16, w: (K, N) bf16, b: (N,) fp32 -> (M, N)."""
    M, K = x.shape
    N = w.shape[1]
    tm, tn, Mp, Np = _grid_tiles(M, N)
    xp = _pad_axis(x, 0, Mp)
    wp = _pad_axis(w, 1, Np)
    bp = _pad_axis(b.reshape(1, N).astype(jnp.float32), 1, Np)
    out = pl.pallas_call(
        functools.partial(_matmul_bias_kernel, activation=activation),
        out_shape=jax.ShapeDtypeStruct((Mp, Np), out_dtype),
        grid=(Mp // tm, Np // tn),
        in_specs=[
            pl.BlockSpec((tm, K), lambda i, j: (i, 0)),
            pl.BlockSpec((K, tn), lambda i, j: (0, j)),
            pl.BlockSpec((1, tn), lambda i, j: (0, j)),
        ],
        out_specs=pl.BlockSpec((tm, tn), lambda i, j: (i, j)),
        compiler_params=_PARALLEL2,
    )(xp, wp, bp)
    return out[:M, :N]


def ln_linear(x, g, beta, w, b, *, activation="none", eps=1e-6,
              out_dtype=jnp.bfloat16):
    """out = (LayerNorm(x) * g + beta) @ w + b  (optional GELU)."""
    M, K = x.shape
    N = w.shape[1]
    tm, tn, Mp, Np = _grid_tiles(M, N)
    xp = _pad_axis(x, 0, Mp)
    wp = _pad_axis(w, 1, Np)
    bp = _pad_axis(b.reshape(1, N).astype(jnp.float32), 1, Np)
    out = pl.pallas_call(
        functools.partial(_ln_matmul_kernel, activation=activation, eps=eps),
        out_shape=jax.ShapeDtypeStruct((Mp, Np), out_dtype),
        grid=(Mp // tm, Np // tn),
        in_specs=[
            pl.BlockSpec((tm, K), lambda i, j: (i, 0)),
            pl.BlockSpec((1, K), lambda i, j: (0, 0)),
            pl.BlockSpec((1, K), lambda i, j: (0, 0)),
            pl.BlockSpec((K, tn), lambda i, j: (0, j)),
            pl.BlockSpec((1, tn), lambda i, j: (0, j)),
        ],
        out_specs=pl.BlockSpec((tm, tn), lambda i, j: (i, j)),
        compiler_params=_PARALLEL2,
    )(xp, g.reshape(1, K).astype(jnp.float32), beta.reshape(1, K).astype(jnp.float32), wp, bp)
    return out[:M, :N]


def linear_scale_residual(h, w, b, res, ls, *, out_dtype=jnp.bfloat16):
    """out = res + ls * (h @ w + b)   (DINOv2 LayerScale residual fused as epilogue)."""
    M, K = h.shape
    N = w.shape[1]
    tm, tn, Mp, Np = _grid_tiles(M, N)
    hp = _pad_axis(h, 0, Mp)
    wp = _pad_axis(w, 1, Np)
    bp = _pad_axis(b.reshape(1, N).astype(jnp.float32), 1, Np)
    rp = _pad_axis(_pad_axis(res, 0, Mp), 1, Np)
    lsp = _pad_axis(ls.reshape(1, N).astype(jnp.float32), 1, Np)
    out = pl.pallas_call(
        _matmul_scale_residual_kernel,
        out_shape=jax.ShapeDtypeStruct((Mp, Np), out_dtype),
        grid=(Mp // tm, Np // tn),
        in_specs=[
            pl.BlockSpec((tm, K), lambda i, j: (i, 0)),
            pl.BlockSpec((K, tn), lambda i, j: (0, j)),
            pl.BlockSpec((1, tn), lambda i, j: (0, j)),
            pl.BlockSpec((tm, tn), lambda i, j: (i, j)),
            pl.BlockSpec((1, tn), lambda i, j: (0, j)),
        ],
        out_specs=pl.BlockSpec((tm, tn), lambda i, j: (i, j)),
        compiler_params=_PARALLEL2,
    )(hp, wp, bp, rp, lsp)
    return out[:M, :N]


def layernorm(x, g, b, *, eps=1e-6, out_dtype=jnp.float32):
    """Standalone LayerNorm (used only for the final norm of collected layers)."""
    M, D = x.shape
    tm = M if M <= _TM else _TM
    Mp = _ceil_to(M, tm)
    xp = _pad_axis(x, 0, Mp)
    out = pl.pallas_call(
        functools.partial(_layernorm_kernel, eps=eps),
        out_shape=jax.ShapeDtypeStruct((Mp, D), out_dtype),
        grid=(Mp // tm,),
        in_specs=[
            pl.BlockSpec((tm, D), lambda i: (i, 0)),
            pl.BlockSpec((1, D), lambda i: (0, 0)),
            pl.BlockSpec((1, D), lambda i: (0, 0)),
        ],
        out_specs=pl.BlockSpec((tm, D), lambda i: (i, 0)),
        compiler_params=_PARALLEL1,
    )(xp, g.reshape(1, D).astype(jnp.float32), b.reshape(1, D).astype(jnp.float32))
    return out[:M]


def attention(qkv, *, num_heads):
    """qkv: (B, T, 3D) bf16 in torch (3, H, dh) column order -> attention output (B, T, D)."""
    B, T, threeD = qkv.shape
    D = threeD // 3
    dh = D // num_heads
    scale = dh ** -0.5
    return pl.pallas_call(
        functools.partial(_attn_kernel, num_heads=num_heads, dh=dh, scale=scale),
        out_shape=jax.ShapeDtypeStruct((B, T, D), jnp.bfloat16),
        grid=(B,),
        in_specs=[pl.BlockSpec((1, T, threeD), lambda b: (b, 0, 0))],
        out_specs=pl.BlockSpec((1, T, D), lambda b: (b, 0, 0)),
        compiler_params=_PARALLEL1,
    )(qkv)


# ----------------------------- parameter init -----------------------------


def init_params(key, *, in_chans, patch, embed_dim, depth, mlp_hidden, num_patches):
    keys = jax.random.split(key, 3 + depth)

    def trunc(k, shape, std=0.02, dtype=jnp.float32):
        return (std * jax.random.normal(k, shape)).astype(dtype)

    params = {
        # PatchEmbed conv weight (D, C, p, p), bias (D,)
        "patch_w": trunc(keys[0], (embed_dim, in_chans, patch, patch)),
        "patch_b": jnp.zeros((embed_dim,), jnp.float32),
        "cls_token": trunc(keys[1], (1, 1, embed_dim)),
        "pos_embed": trunc(keys[2], (1, 1 + num_patches, embed_dim)),
        "norm_g": jnp.ones((embed_dim,), jnp.float32),
        "norm_b": jnp.zeros((embed_dim,), jnp.float32),
        "blocks": [],
    }
    for i in range(depth):
        bk = jax.random.split(keys[3 + i], 4)
        params["blocks"].append(
            {
                "ln1_g": jnp.ones((embed_dim,), jnp.float32),
                "ln1_b": jnp.zeros((embed_dim,), jnp.float32),
                "qkv_w": trunc(bk[0], (embed_dim, 3 * embed_dim), dtype=jnp.bfloat16),
                "qkv_b": jnp.zeros((3 * embed_dim,), jnp.float32),
                "proj_w": trunc(bk[1], (embed_dim, embed_dim), dtype=jnp.bfloat16),
                "proj_b": jnp.zeros((embed_dim,), jnp.float32),
                "ls1": jnp.ones((embed_dim,), jnp.float32),  # LayerScale (pretrained uses ~1e-5)
                "ln2_g": jnp.ones((embed_dim,), jnp.float32),
                "ln2_b": jnp.zeros((embed_dim,), jnp.float32),
                "fc1_w": trunc(bk[2], (embed_dim, mlp_hidden), dtype=jnp.bfloat16),
                "fc1_b": jnp.zeros((mlp_hidden,), jnp.float32),
                "fc2_w": trunc(bk[3], (mlp_hidden, embed_dim), dtype=jnp.bfloat16),
                "fc2_b": jnp.zeros((embed_dim,), jnp.float32),
                "ls2": jnp.ones((embed_dim,), jnp.float32),
            }
        )
    return params


# ----------------------------- forward pass -----------------------------


def dinov2_forward(params, imgs, *, patch, num_heads, out_index):
    """DINOv2 backbone.get_intermediate_layers(imgs, n=out_index, reshape=True).

    imgs: NCHW float32. Returns tuple of (B, D, H/p, W/p) arrays, one per out_index.
    """
    B, C, H, W = imgs.shape
    Hp, Wp = H // patch, W // patch
    N = Hp * Wp
    D = params["patch_b"].shape[0]

    # --- PatchEmbed: Conv2d(kernel=stride=patch) == per-patch flatten + matmul ---
    x = imgs.reshape(B, C, Hp, patch, Wp, patch)
    x = x.transpose(0, 2, 4, 1, 3, 5).reshape(B * N, C * patch * patch)  # (c, i, j) order
    x = x.astype(jnp.bfloat16)
    w_pe = params["patch_w"].reshape(D, C * patch * patch).T.astype(jnp.bfloat16)
    x = linear(x, w_pe, params["patch_b"]).reshape(B, N, D)              # bf16

    # --- prepend cls token, add positional embedding (no register tokens) ---
    cls = jnp.broadcast_to(params["cls_token"], (B, 1, D)).astype(jnp.bfloat16)
    x = jnp.concatenate([cls, x], axis=1) + params["pos_embed"].astype(jnp.bfloat16)
    T = N + 1
    x2 = x.reshape(B * T, D)

    collected = {}
    for li, blk in enumerate(params["blocks"]):
        # --- attention: x = x + ls1 * proj(attn(norm1(x)))  (LN & residual fused) ---
        qkv = ln_linear(x2, blk["ln1_g"], blk["ln1_b"], blk["qkv_w"], blk["qkv_b"])
        attn_out = attention(qkv.reshape(B, T, 3 * D), num_heads=num_heads)  # (B, T, D)
        x2 = linear_scale_residual(attn_out.reshape(B * T, D),
                                   blk["proj_w"], blk["proj_b"], x2, blk["ls1"])

        # --- MLP: x = x + ls2 * fc2(gelu(fc1(norm2(x))))  (LN, GELU & residual fused) ---
        h = ln_linear(x2, blk["ln2_g"], blk["ln2_b"], blk["fc1_w"], blk["fc1_b"],
                      activation="gelu")
        x2 = linear_scale_residual(h, blk["fc2_w"], blk["fc2_b"], x2, blk["ls2"])

        if li in out_index:
            collected[li] = x2

    # --- get_intermediate_layers post-processing: norm=True, drop cls, reshape=True ---
    results = []
    for li in out_index:
        o2 = layernorm(collected[li], params["norm_g"], params["norm_b"])   # fp32
        o2 = o2.reshape(B, T, D)[:, 1:, :]                                  # drop cls token
        o2 = o2.reshape(B, Hp, Wp, D).transpose(0, 3, 1, 2)                 # (B, D, Hp, Wp)
        results.append(o2)
    return tuple(results)


# ----------------------------- main -----------------------------


if __name__ == "__main__":
    key = jax.random.PRNGKey(0)
    kp, kx = jax.random.split(key)

    # small DINOv2-style config
    B, C, H, W = 2, 3, 16, 16
    patch = 8
    embed_dim = 32
    depth = 4
    num_heads = 2
    mlp_hidden = 4 * embed_dim
    out_index = (2, 3)
    num_patches = (H // patch) * (W // patch)

    params = init_params(
        kp,
        in_chans=C,
        patch=patch,
        embed_dim=embed_dim,
        depth=depth,
        mlp_hidden=mlp_hidden,
        num_patches=num_patches,
    )
    imgs = jax.random.normal(kx, (B, C, H, W), dtype=jnp.float32)

    fwd = jax.jit(functools.partial(dinov2_forward, patch=patch,
                                    num_heads=num_heads, out_index=out_index))
    outs = fwd(params, imgs)
    outs = jax.block_until_ready(outs)

    expected = (B, embed_dim, H // patch, W // patch)
    assert len(outs) == len(out_index)
    assert all(o.shape == expected for o in outs)
    assert all(bool(jnp.all(jnp.isfinite(o))) for o in outs)
    print("KERNEL_OK")
</pallas_src>

<mosaic_0001>
module attributes {stable_mosaic.version = 11 : i64} {
  func.func @_matmul_bias_kernel(%arg0: i32, %arg1: i32, %arg2: memref<8x192xbf16, #tpu.memory_space<vmem>>, %arg3: memref<192x32xbf16, #tpu.memory_space<vmem>>, %arg4: memref<1x32xf32, #tpu.memory_space<vmem>>, %arg5: memref<8x32xbf16, #tpu.memory_space<vmem>>) attributes {dimension_semantics = [#tpu.dimension_semantics<parallel>, #tpu.dimension_semantics<parallel>], iteration_bounds = array<i64: 1, 1>, scalar_prefetch = 0 : i64, scratch_operands = 0 : i64, tpu.core_type = #tpu.core_type<tc>, window_params = [{transform_indices = @transform_0, window_bounds = array<i64: 8, 192>}, {transform_indices = @transform_1, window_bounds = array<i64: 192, 32>}, {transform_indices = @transform_2, window_bounds = array<i64: 1, 32>}, {transform_indices = @transform_3, window_bounds = array<i64: 8, 32>}]} {
    %c0 = arith.constant 0 : index
    %c0_0 = arith.constant 0 : index
    %0 = vector.load %arg2[%c0, %c0_0] : memref<8x192xbf16, #tpu.memory_space<vmem>>, vector<8x192xbf16>
    %c0_1 = arith.constant 0 : index
    %c0_2 = arith.constant 0 : index
    %1 = vector.load %arg3[%c0_1, %c0_2] : memref<192x32xbf16, #tpu.memory_space<vmem>>, vector<192x32xbf16>
    %cst = arith.constant dense<0.000000e+00> : vector<8x32xf32>
    %2 = tpu.matmul %0, %1, %cst {dimension_numbers = #tpu.dot_dimension_numbers<[1], [0], [0], [1], [0, 0, 1, 1], [], []>} : vector<8x192xbf16>, vector<192x32xbf16>, vector<8x32xf32> -> vector<8x32xf32>
    %c0_3 = arith.constant 0 : index
    %c0_4 = arith.constant 0 : index
    %3 = vector.load %arg4[%c0_3, %c0_4] : memref<1x32xf32, #tpu.memory_space<vmem>>, vector<1x32xf32>
    %4 = vector.broadcast %3 : vector<1x32xf32> to vector<8x32xf32>
    %5 = arith.addf %2, %4 : vector<8x32xf32>
    %6 = arith.truncf %5 : vector<8x32xf32> to vector<8x32xbf16>
    %c0_5 = arith.constant 0 : index
    %c0_6 = arith.constant 0 : index
    %7 = vector.load %arg5[%c0_5, %c0_6] : memref<8x32xbf16, #tpu.memory_space<vmem>>, vector<8x32xbf16>
    tpu.vector_store %arg5[%c0_5, %c0_6], %6 {strides = array<i32>} : memref<8x32xbf16, #tpu.memory_space<vmem>>, vector<8x32xbf16>,
    return
  }
  func.func @transform_0(%arg0: i32, %arg1: i32) -> (i32, i32) {
    %c0_i32 = arith.constant 0 : i32
    %c0_i32_0 = arith.constant 0 : i32
    return %arg0, %c0_i32 : i32, i32
  }
  func.func @transform_1(%arg0: i32, %arg1: i32) -> (i32, i32) {
    %c0_i32 = arith.constant 0 : i32
    %c0_i32_0 = arith.constant 0 : i32
    return %c0_i32, %arg1 : i32, i32
  }
  func.func @transform_2(%arg0: i32, %arg1: i32) -> (i32, i32) {
    %c0_i32 = arith.constant 0 : i32
    %c0_i32_0 = arith.constant 0 : i32
    return %c0_i32, %arg1 : i32, i32
  }
  func.func @transform_3(%arg0: i32, %arg1: i32) -> (i32, i32) {
    %c0_i32 = arith.constant 0 : i32
    return %arg0, %arg1 : i32, i32
  }
}

module attributes {stable_mosaic.version = 11 : i64} {
  func.func @_attn_kernel(%arg0: i32, %arg1: memref<1x5x96xbf16, #tpu.memory_space<vmem>>, %arg2: memref<1x5x32xbf16, #tpu.memory_space<vmem>>) attributes {dimension_semantics = [#tpu.dimension_semantics<parallel>], iteration_bounds = array<i64: 2>, scalar_prefetch = 0 : i64, scratch_operands = 0 : i64, tpu.core_type = #tpu.core_type<tc>, window_params = [{transform_indices = @transform_0, window_bounds = array<i64: 1, 5, 96>}, {transform_indices = @transform_1, window_bounds = array<i64: 1, 5, 32>}]} {
    %c0 = arith.constant 0 : index
    %c0_0 = arith.constant 0 : index
    %c0_1 = arith.constant 0 : index
    %0 = vector.load %arg1[%c0, %c0_0, %c0_1] : memref<1x5x96xbf16, #tpu.memory_space<vmem>>, vector<1x5x96xbf16>
    %1 = vector.shape_cast %0 : vector<1x5x96xbf16> to vector<5x96xbf16>
    %2 = vector.extract_strided_slice %1 {offsets = [0, 0], sizes = [5, 16], strides = [1, 1]} : vector<5x96xbf16> to vector<5x16xbf16>
    %3 = vector.extract_strided_slice %1 {offsets = [0, 32], sizes = [5, 16], strides = [1, 1]} : vector<5x96xbf16> to vector<5x16xbf16>
    %4 = vector.extract_strided_slice %1 {offsets = [0, 64], sizes = [5, 16], strides = [1, 1]} : vector<5x96xbf16> to vector<5x16xbf16>
    %cst = arith.constant dense<0.000000e+00> : vector<5x5xf32>
    %5 = tpu.matmul %2, %3, %cst {dimension_numbers = #tpu.dot_dimension_numbers<[1], [1], [0], [0], [0, 0, 1, 0], [], []>} : vector<5x16xbf16>, vector<5x16xbf16>, vector<5x5xf32> -> vector<5x5xf32>
    %cst_2 = arith.constant 2.500000e-01 : f32
    %6 = vector.broadcast %cst_2 : f32 to vector<5x5xf32>
    %7 = arith.mulf %5, %6 : vector<5x5xf32>
    %cst_3 = arith.constant dense<0xFF800000> : vector<5xf32>
    %8 = vector.multi_reduction <maximumf>, %7, %cst_3 [1] : vector<5x5xf32> to vector<5xf32>
    %9 = vector.shape_cast %8 : vector<5xf32> to vector<5x1xf32>
    %10 = vector.broadcast %9 : vector<5x1xf32> to vector<5x5xf32>
    %11 = arith.subf %7, %10 : vector<5x5xf32>
    %12 = math.exp %11 : vector<5x5xf32>
    %cst_4 = arith.constant dense<0.000000e+00> : vector<5xf32>
    %13 = vector.multi_reduction <add>, %12, %cst_4 [1] : vector<5x5xf32> to vector<5xf32>
    %14 = vector.shape_cast %13 : vector<5xf32> to vector<5x1xf32>
    %15 = tpu.reciprocal %14 {approx = true} : vector<5x1xf32> -> vector<5x1xf32>
    %16 = vector.broadcast %15 : vector<5x1xf32> to vector<5x5xf32>
    %17 = arith.mulf %12, %16 : vector<5x5xf32>
    %18 = arith.truncf %17 : vector<5x5xf32> to vector<5x5xbf16>
    %cst_5 = arith.constant dense<0.000000e+00> : vector<5x16xf32>
    %19 = tpu.matmul %18, %4, %cst_5 {dimension_numbers = #tpu.dot_dimension_numbers<[1], [0], [0], [1], [0, 0, 1, 1], [], []>} : vector<5x5xbf16>, vector<5x16xbf16>, vector<5x16xf32> -> vector<5x16xf32>
    %20 = vector.extract_strided_slice %1 {offsets = [0, 16], sizes = [5, 16], strides = [1, 1]} : vector<5x96xbf16> to vector<5x16xbf16>
    %21 = vector.extract_strided_slice %1 {offsets = [0, 48], sizes = [5, 16], strides = [1, 1]} : vector<5x96xbf16> to vector<5x16xbf16>
    %22 = vector.extract_strided_slice %1 {offsets = [0, 80], sizes = [5, 16], strides = [1, 1]} : vector<5x96xbf16> to vector<5x16xbf16>
    %cst_6 = arith.constant dense<0.000000e+00> : vector<5x5xf32>
    %23 = tpu.matmul %20, %21, %cst_6 {dimension_numbers = #tpu.dot_dimension_numbers<[1], [1], [0], [0], [0, 0, 1, 0], [], []>} : vector<5x16xbf16>, vector<5x16xbf16>, vector<5x5xf32> -> vector<5x5xf32>
    %cst_7 = arith.constant 2.500000e-01 : f32
    %24 = vector.broadcast %cst_7 : f32 to vector<5x5xf32>
    %25 = arith.mulf %23, %24 : vector<5x5xf32>
    %cst_8 = arith.constant dense<0xFF800000> : vector<5xf32>
    %26 = vector.multi_reduction <maximumf>, %25, %cst_8 [1] : vector<5x5xf32> to vector<5xf32>
    %27 = vector.shape_cast %26 : vector<5xf32> to vector<5x1xf32>
    %28 = vector.broadcast %27 : vector<5x1xf32> to vector<5x5xf32>
    %29 = arith.subf %25, %28 : vector<5x5xf32>
    %30 = math.exp %29 : vector<5x5xf32>
    %cst_9 = arith.constant dense<0.000000e+00> : vector<5xf32>
    %31 = vector.multi_reduction <add>, %30, %cst_9 [1] : vector<5x5xf32> to vector<5xf32>
    %32 = vector.shape_cast %31 : vector<5xf32> to vector<5x1xf32>
    %33 = tpu.reciprocal %32 {approx = true} : vector<5x1xf32> -> vector<5x1xf32>
    %34 = vector.broadcast %33 : vector<5x1xf32> to vector<5x5xf32>
    %35 = arith.mulf %30, %34 : vector<5x5xf32>
    %36 = arith.truncf %35 : vector<5x5xf32> to vector<5x5xbf16>
    %cst_10 = arith.constant dense<0.000000e+00> : vector<5x16xf32>
    %37 = tpu.matmul %36, %22, %cst_10 {dimension_numbers = #tpu.dot_dimension_numbers<[1], [0], [0], [1], [0, 0, 1, 1], [], []>} : vector<5x5xbf16>, vector<5x16xbf16>, vector<5x16xf32> -> vector<5x16xf32>
    %38 = tpu.concatenate %19, %37 in 1 : vector<5x16xf32>, vector<5x16xf32> -> vector<5x32xf32>
    %39 = arith.truncf %38 : vector<5x32xf32> to vector<5x32xbf16>
    %c0_11 = arith.constant 0 : index
    %c0_12 = arith.constant 0 : index
    %c0_13 = arith.constant 0 : index
    %40 = vector.load %arg2[%c0_11, %c0_12, %c0_13] : memref<1x5x32xbf16, #tpu.memory_space<vmem>>, vector<1x5x32xbf16>
    %41 = vector.shape_cast %40 : vector<1x5x32xbf16> to vector<5x32xbf16>
    %42 = vector.shape_cast %39 : vector<5x32xbf16> to vector<1x5x32xbf16>
    tpu.vector_store %arg2[%c0_11, %c0_12, %c0_13], %42 {strides = array<i32>} : memref<1x5x32xbf16, #tpu.memory_space<vmem>>, vector<1x5x32xbf16>,
    return
  }
  func.func @transform_0(%arg0: i32) -> (i32, i32, i32) {
    %c0_i32 = arith.constant 0 : i32
    %c0_i32_0 = arith.constant 0 : i32
    %c0_i32_1 = arith.constant 0 : i32
    return %arg0, %c0_i32, %c0_i32_0 : i32, i32, i32
  }
  func.func @transform_1(%arg0: i32) -> (i32, i32, i32) {
    %c0_i32 = arith.constant 0 : i32
    %c0_i32_0 = arith.constant 0 : i32
    %c0_i32_1 = arith.constant 0 : i32
    return %arg0, %c0_i32, %c0_i32_0 : i32, i32, i32
  }
}

module attributes {stable_mosaic.version = 11 : i64} {
  func.func @_ln_matmul_kernel(%arg0: i32, %arg1: i32, %arg2: memref<10x32xbf16, #tpu.memory_space<vmem>>, %arg3: memref<1x32xf32, #tpu.memory_space<vmem>>, %arg4: memref<1x32xf32, #tpu.memory_space<vmem>>, %arg5: memref<32x96xbf16, #tpu.memory_space<vmem>>, %arg6: memref<1x96xf32, #tpu.memory_space<vmem>>, %arg7: memref<10x96xbf16, #tpu.memory_space<vmem>>) attributes {dimension_semantics = [#tpu.dimension_semantics<parallel>, #tpu.dimension_semantics<parallel>], iteration_bounds = array<i64: 1, 1>, scalar_prefetch = 0 : i64, scratch_operands = 0 : i64, tpu.core_type = #tpu.core_type<tc>, window_params = [{transform_indices = @transform_0, window_bounds = array<i64: 10, 32>}, {pipeline_mode = #tpu.pipeline_mode<synchronous>, transform_indices = @transform_1, window_bounds = array<i64: 1, 32>}, {pipeline_mode = #tpu.pipeline_mode<synchronous>, transform_indices = @transform_2, window_bounds = array<i64: 1, 32>}, {transform_indices = @transform_3, window_bounds = array<i64: 32, 96>}, {transform_indices = @transform_4, window_bounds = array<i64: 1, 96>}, {transform_indices = @transform_5, window_bounds = array<i64: 10, 96>}]} {
    %c0 = arith.constant 0 : index
    %c0_0 = arith.constant 0 : index
    %0 = vector.load %arg2[%c0, %c0_0] : memref<10x32xbf16, #tpu.memory_space<vmem>>, vector<10x32xbf16>
    %1 = arith.extf %0 : vector<10x32xbf16> to vector<10x32xf32>
    %cst = arith.constant dense<0.000000e+00> : vector<10xf32>
    %2 = vector.multi_reduction <add>, %1, %cst [1] : vector<10x32xf32> to vector<10xf32>
    %3 = vector.shape_cast %2 : vector<10xf32> to vector<10x1xf32>
    %cst_1 = arith.constant 3.200000e+01 : f32
    %4 = vector.broadcast %cst_1 : f32 to vector<10x1xf32>
    %5 = arith.divf %3, %4 : vector<10x1xf32>
    %6 = vector.broadcast %5 : vector<10x1xf32> to vector<10x32xf32>
    %7 = arith.subf %1, %6 : vector<10x32xf32>
    %8 = arith.mulf %7, %7 : vector<10x32xf32>
    %cst_2 = arith.constant dense<0.000000e+00> : vector<10xf32>
    %9 = vector.multi_reduction <add>, %8, %cst_2 [1] : vector<10x32xf32> to vector<10xf32>
    %10 = vector.shape_cast %9 : vector<10xf32> to vector<10x1xf32>
    %cst_3 = arith.constant 3.200000e+01 : f32
    %11 = vector.broadcast %cst_3 : f32 to vector<10x1xf32>
    %12 = arith.divf %10, %11 : vector<10x1xf32>
    %cst_4 = arith.constant 9.99999997E-7 : f32
    %13 = vector.broadcast %cst_4 : f32 to vector<10x1xf32>
    %14 = arith.addf %12, %13 : vector<10x1xf32>
    %15 = math.rsqrt %14 : vector<10x1xf32>
    %16 = vector.broadcast %15 : vector<10x1xf32> to vector<10x32xf32>
    %17 = arith.mulf %7, %16 : vector<10x32xf32>
    %c0_5 = arith.constant 0 : index
    %c0_6 = arith.constant 0 : index
    %18 = vector.load %arg3[%c0_5, %c0_6] : memref<1x32xf32, #tpu.memory_space<vmem>>, vector<1x32xf32>
    %19 = vector.broadcast %18 : vector<1x32xf32> to vector<10x32xf32>
    %20 = arith.mulf %17, %19 : vector<10x32xf32>
    %c0_7 = arith.constant 0 : index
    %c0_8 = arith.constant 0 : index
    %21 = vector.load %arg4[%c0_7, %c0_8] : memref<1x32xf32, #tpu.memory_space<vmem>>, vector<1x32xf32>
    %22 = vector.broadcast %21 : vector<1x32xf32> to vector<10x32xf32>
    %23 = arith.addf %20, %22 : vector<10x32xf32>
    %24 = arith.truncf %23 : vector<10x32xf32> to vector<10x32xbf16>
    %c0_9 = arith.constant 0 : index
    %c0_10 = arith.constant 0 : index
    %25 = vector.load %arg5[%c0_9, %c0_10] : memref<32x96xbf16, #tpu.memory_space<vmem>>, vector<32x96xbf16>
    %cst_11 = arith.constant dense<0.000000e+00> : vector<10x96xf32>
    %26 = tpu.matmul %24, %25, %cst_11 {dimension_numbers = #tpu.dot_dimension_numbers<[1], [0], [0], [1], [0, 0, 1, 1], [], []>} : vector<10x32xbf16>, vector<32x96xbf16>, vector<10x96xf32> -> vector<10x96xf32>
    %c0_12 = arith.constant 0 : index
    %c0_13 = arith.constant 0 : index
    %27 = vector.load %arg6[%c0_12, %c0_13] : memref<1x96xf32, #tpu.memory_space<vmem>>, vector<1x96xf32>
    %28 = vector.broadcast %27 : vector<1x96xf32> to vector<10x96xf32>
    %29 = arith.addf %26, %28 : vector<10x96xf32>
    %30 = arith.truncf %29 : vector<10x96xf32> to vector<10x96xbf16>
    %c0_14 = arith.constant 0 : index
    %c0_15 = arith.constant 0 : index
    %31 = vector.load %arg7[%c0_14, %c0_15] : memref<10x96xbf16, #tpu.memory_space<vmem>>, vector<10x96xbf16>
    tpu.vector_store %arg7[%c0_14, %c0_15], %30 {strides = array<i32>} : memref<10x96xbf16, #tpu.memory_space<vmem>>, vector<10x96xbf16>,
    return
  }
  func.func @transform_0(%arg0: i32, %arg1: i32) -> (i32, i32) {
    %c0_i32 = arith.constant 0 : i32
    %c0_i32_0 = arith.constant 0 : i32
    return %arg0, %c0_i32 : i32, i32
  }
  func.func @transform_1(%arg0: i32, %arg1: i32) -> (i32, i32) {
    %c0_i32 = arith.constant 0 : i32
    %c0_i32_0 = arith.constant 0 : i32
    %c0_i32_1 = arith.constant 0 : i32
    return %c0_i32, %c0_i32_0 : i32, i32
  }
  func.func @transform_2(%arg0: i32, %arg1: i32) -> (i32, i32) {
    %c0_i32 = arith.constant 0 : i32
    %c0_i32_0 = arith.constant 0 : i32
    %c0_i32_1 = arith.constant 0 : i32
    return %c0_i32, %c0_i32_0 : i32, i32
  }
  func.func @transform_3(%arg0: i32, %arg1: i32) -> (i32, i32) {
    %c0_i32 = arith.constant 0 : i32
    %c0_i32_0 = arith.constant 0 : i32
    return %c0_i32, %arg1 : i32, i32
  }
  func.func @transform_4(%arg0: i32, %arg1: i32) -> (i32, i32) {
    %c0_i32 = arith.constant 0 : i32
    %c0_i32_0 = arith.constant 0 : i32
    return %c0_i32, %arg1 : i32, i32
  }
  func.func @transform_5(%arg0: i32, %arg1: i32) -> (i32, i32) {
    %c0_i32 = arith.constant 0 : i32
    return %arg0, %arg1 : i32, i32
  }
}

module attributes {stable_mosaic.version = 11 : i64} {
  func.func @_matmul_scale_residual_kernel(%arg0: i32, %arg1: i32, %arg2: memref<10x32xbf16, #tpu.memory_space<vmem>>, %arg3: memref<32x32xbf16, #tpu.memory_space<vmem>>, %arg4: memref<1x32xf32, #tpu.memory_space<vmem>>, %arg5: memref<10x32xbf16, #tpu.memory_space<vmem>>, %arg6: memref<1x32xf32, #tpu.memory_space<vmem>>, %arg7: memref<10x32xbf16, #tpu.memory_space<vmem>>) attributes {dimension_semantics = [#tpu.dimension_semantics<parallel>, #tpu.dimension_semantics<parallel>], iteration_bounds = array<i64: 1, 1>, scalar_prefetch = 0 : i64, scratch_operands = 0 : i64, tpu.core_type = #tpu.core_type<tc>, window_params = [{transform_indices = @transform_0, window_bounds = array<i64: 10, 32>}, {transform_indices = @transform_1, window_bounds = array<i64: 32, 32>}, {transform_indices = @transform_2, window_bounds = array<i64: 1, 32>}, {transform_indices = @transform_3, window_bounds = array<i64: 10, 32>}, {transform_indices = @transform_4, window_bounds = array<i64: 1, 32>}, {transform_indices = @transform_5, window_bounds = array<i64: 10, 32>}]} {
    %c0 = arith.constant 0 : index
    %c0_0 = arith.constant 0 : index
    %0 = vector.load %arg2[%c0, %c0_0] : memref<10x32xbf16, #tpu.memory_space<vmem>>, vector<10x32xbf16>
    %c0_1 = arith.constant 0 : index
    %c0_2 = arith.constant 0 : index
    %1 = vector.load %arg3[%c0_1, %c0_2] : memref<32x32xbf16, #tpu.memory_space<vmem>>, vector<32x32xbf16>
    %cst = arith.constant dense<0.000000e+00> : vector<10x32xf32>
    %2 = tpu.matmul %0, %1, %cst {dimension_numbers = #tpu.dot_dimension_numbers<[1], [0], [0], [1], [0, 0, 1, 1], [], []>} : vector<10x32xbf16>, vector<32x32xbf16>, vector<10x32xf32> -> vector<10x32xf32>
    %c0_3 = arith.constant 0 : index
    %c0_4 = arith.constant 0 : index
    %3 = vector.load %arg4[%c0_3, %c0_4] : memref<1x32xf32, #tpu.memory_space<vmem>>, vector<1x32xf32>
    %4 = vector.broadcast %3 : vector<1x32xf32> to vector<10x32xf32>
    %5 = arith.addf %2, %4 : vector<10x32xf32>
    %c0_5 = arith.constant 0 : index
    %c0_6 = arith.constant 0 : index
    %6 = vector.load %arg5[%c0_5, %c0_6] : memref<10x32xbf16, #tpu.memory_space<vmem>>, vector<10x32xbf16>
    %7 = arith.extf %6 : vector<10x32xbf16> to vector<10x32xf32>
    %c0_7 = arith.constant 0 : index
    %c0_8 = arith.constant 0 : index
    %8 = vector.load %arg6[%c0_7, %c0_8] : memref<1x32xf32, #tpu.memory_space<vmem>>, vector<1x32xf32>
    %9 = vector.broadcast %8 : vector<1x32xf32> to vector<10x32xf32>
    %10 = arith.mulf %9, %5 : vector<10x32xf32>
    %11 = arith.addf %7, %10 : vector<10x32xf32>
    %12 = arith.truncf %11 : vector<10x32xf32> to vector<10x32xbf16>
    %c0_9 = arith.constant 0 : index
    %c0_10 = arith.constant 0 : index
    %13 = vector.load %arg7[%c0_9, %c0_10] : memref<10x32xbf16, #tpu.memory_space<vmem>>, vector<10x32xbf16>
    tpu.vector_store %arg7[%c0_9, %c0_10], %12 {strides = array<i32>} : memref<10x32xbf16, #tpu.memory_space<vmem>>, vector<10x32xbf16>,
    return
  }
  func.func @transform_0(%arg0: i32, %arg1: i32) -> (i32, i32) {
    %c0_i32 = arith.constant 0 : i32
    %c0_i32_0 = arith.constant 0 : i32
    return %arg0, %c0_i32 : i32, i32
  }
  func.func @transform_1(%arg0: i32, %arg1: i32) -> (i32, i32) {
    %c0_i32 = arith.constant 0 : i32
    %c0_i32_0 = arith.constant 0 : i32
    return %c0_i32, %arg1 : i32, i32
  }
  func.func @transform_2(%arg0: i32, %arg1: i32) -> (i32, i32) {
    %c0_i32 = arith.constant 0 : i32
    %c0_i32_0 = arith.constant 0 : i32
    return %c0_i32, %arg1 : i32, i32
  }
  func.func @transform_3(%arg0: i32, %arg1: i32) -> (i32, i32) {
    %c0_i32 = arith.constant 0 : i32
    return %arg0, %arg1 : i32, i32
  }
  func.func @transform_4(%arg0: i32, %arg1: i32) -> (i32, i32) {
    %c0_i32 = arith.constant 0 : i32
    %c0_i32_0 = arith.constant 0 : i32
    return %c0_i32, %arg1 : i32, i32
  }
  func.func @transform_5(%arg0: i32, %arg1: i32) -> (i32, i32) {
    %c0_i32 = arith.constant 0 : i32
    return %arg0, %arg1 : i32, i32
  }
}

module attributes {stable_mosaic.version = 11 : i64} {
  func.func @_ln_matmul_kernel(%arg0: i32, %arg1: i32, %arg2: memref<10x32xbf16, #tpu.memory_space<vmem>>, %arg3: memref<1x32xf32, #tpu.memory_space<vmem>>, %arg4: memref<1x32xf32, #tpu.memory_space<vmem>>, %arg5: memref<32x128xbf16, #tpu.memory_space<vmem>>, %arg6: memref<1x128xf32, #tpu.memory_space<vmem>>, %arg7: memref<10x128xbf16, #tpu.memory_space<vmem>>) attributes {dimension_semantics = [#tpu.dimension_semantics<parallel>, #tpu.dimension_semantics<parallel>], iteration_bounds = array<i64: 1, 1>, scalar_prefetch = 0 : i64, scratch_operands = 0 : i64, tpu.core_type = #tpu.core_type<tc>, window_params = [{transform_indices = @transform_0, window_bounds = array<i64: 10, 32>}, {pipeline_mode = #tpu.pipeline_mode<synchronous>, transform_indices = @transform_1, window_bounds = array<i64: 1, 32>}, {pipeline_mode = #tpu.pipeline_mode<synchronous>, transform_indices = @transform_2, window_bounds = array<i64: 1, 32>}, {transform_indices = @transform_3, window_bounds = array<i64: 32, 128>}, {transform_indices = @transform_4, window_bounds = array<i64: 1, 128>}, {transform_indices = @transform_5, window_bounds = array<i64: 10, 128>}]} {
    %c0 = arith.constant 0 : index
    %c0_0 = arith.constant 0 : index
    %0 = vector.load %arg2[%c0, %c0_0] : memref<10x32xbf16, #tpu.memory_space<vmem>>, vector<10x32xbf16>
    %1 = arith.extf %0 : vector<10x32xbf16> to vector<10x32xf32>
    %cst = arith.constant dense<0.000000e+00> : vector<10xf32>
    %2 = vector.multi_reduction <add>, %1, %cst [1] : vector<10x32xf32> to vector<10xf32>
    %3 = vector.shape_cast %2 : vector<10xf32> to vector<10x1xf32>
    %cst_1 = arith.constant 3.200000e+01 : f32
    %4 = vector.broadcast %cst_1 : f32 to vector<10x1xf32>
    %5 = arith.divf %3, %4 : vector<10x1xf32>
    %6 = vector.broadcast %5 : vector<10x1xf32> to vector<10x32xf32>
    %7 = arith.subf %1, %6 : vector<10x32xf32>
    %8 = arith.mulf %7, %7 : vector<10x32xf32>
    %cst_2 = arith.constant dense<0.000000e+00> : vector<10xf32>
    %9 = vector.multi_reduction <add>, %8, %cst_2 [1] : vector<10x32xf32> to vector<10xf32>
    %10 = vector.shape_cast %9 : vector<10xf32> to vector<10x1xf32>
    %cst_3 = arith.constant 3.200000e+01 : f32
    %11 = vector.broadcast %cst_3 : f32 to vector<10x1xf32>
    %12 = arith.divf %10, %11 : vector<10x1xf32>
    %cst_4 = arith.constant 9.99999997E-7 : f32
    %13 = vector.broadcast %cst_4 : f32 to vector<10x1xf32>
    %14 = arith.addf %12, %13 : vector<10x1xf32>
    %15 = math.rsqrt %14 : vector<10x1xf32>
    %16 = vector.broadcast %15 : vector<10x1xf32> to vector<10x32xf32>
    %17 = arith.mulf %7, %16 : vector<10x32xf32>
    %c0_5 = arith.constant 0 : index
    %c0_6 = arith.constant 0 : index
    %18 = vector.load %arg3[%c0_5, %c0_6] : memref<1x32xf32, #tpu.memory_space<vmem>>, vector<1x32xf32>
    %19 = vector.broadcast %18 : vector<1x32xf32> to vector<10x32xf32>
    %20 = arith.mulf %17, %19 : vector<10x32xf32>
    %c0_7 = arith.constant 0 : index
    %c0_8 = arith.constant 0 : index
    %21 = vector.load %arg4[%c0_7, %c0_8] : memref<1x32xf32, #tpu.memory_space<vmem>>, vector<1x32xf32>
    %22 = vector.broadcast %21 : vector<1x32xf32> to vector<10x32xf32>
    %23 = arith.addf %20, %22 : vector<10x32xf32>
    %24 = arith.truncf %23 : vector<10x32xf32> to vector<10x32xbf16>
    %c0_9 = arith.constant 0 : index
    %c0_10 = arith.constant 0 : index
    %25 = vector.load %arg5[%c0_9, %c0_10] : memref<32x128xbf16, #tpu.memory_space<vmem>>, vector<32x128xbf16>
    %cst_11 = arith.constant dense<0.000000e+00> : vector<10x128xf32>
    %26 = tpu.matmul %24, %25, %cst_11 {dimension_numbers = #tpu.dot_dimension_numbers<[1], [0], [0], [1], [0, 0, 1, 1], [], []>} : vector<10x32xbf16>, vector<32x128xbf16>, vector<10x128xf32> -> vector<10x128xf32>
    %c0_12 = arith.constant 0 : index
    %c0_13 = arith.constant 0 : index
    %27 = vector.load %arg6[%c0_12, %c0_13] : memref<1x128xf32, #tpu.memory_space<vmem>>, vector<1x128xf32>
    %28 = vector.broadcast %27 : vector<1x128xf32> to vector<10x128xf32>
    %29 = arith.addf %26, %28 : vector<10x128xf32>
    %cst_14 = arith.constant 5.000000e-01 : f32
    %30 = vector.broadcast %cst_14 : f32 to vector<10x128xf32>
    %31 = arith.mulf %30, %29 : vector<10x128xf32>
    %cst_15 = arith.constant 0.707106769 : f32
    %32 = vector.broadcast %cst_15 : f32 to vector<10x128xf32>
    %33 = arith.mulf %29, %32 : vector<10x128xf32>
    %34 = math.erf %33 : vector<10x128xf32>
    %cst_16 = arith.constant 1.000000e+00 : f32
    %35 = vector.broadcast %cst_16 : f32 to vector<10x128xf32>
    %36 = arith.addf %35, %34 : vector<10x128xf32>
    %37 = arith.mulf %31, %36 : vector<10x128xf32>
    %38 = arith.truncf %37 : vector<10x128xf32> to vector<10x128xbf16>
    %c0_17 = arith.constant 0 : index
    %c0_18 = arith.constant 0 : index
    %39 = vector.load %arg7[%c0_17, %c0_18] : memref<10x128xbf16, #tpu.memory_space<vmem>>, vector<10x128xbf16>
    tpu.vector_store %arg7[%c0_17, %c0_18], %38 {strides = array<i32>} : memref<10x128xbf16, #tpu.memory_space<vmem>>, vector<10x128xbf16>,
    return
  }
  func.func @transform_0(%arg0: i32, %arg1: i32) -> (i32, i32) {
    %c0_i32 = arith.constant 0 : i32
    %c0_i32_0 = arith.constant 0 : i32
    return %arg0, %c0_i32 : i32, i32
  }
  func.func @transform_1(%arg0: i32, %arg1: i32) -> (i32, i32) {
    %c0_i32 = arith.constant 0 : i32
    %c0_i32_0 = arith.constant 0 : i32
    %c0_i32_1 = arith.constant 0 : i32
    return %c0_i32, %c0_i32_0 : i32, i32
  }
  func.func @transform_2(%arg0: i32, %arg1: i32) -> (i32, i32) {
    %c0_i32 = arith.constant 0 : i32
    %c0_i32_0 = arith.constant 0 : i32
    %c0_i32_1 = arith.constant 0 : i32
    return %c0_i32, %c0_i32_0 : i32, i32
  }
  func.func @transform_3(%arg0: i32, %arg1: i32) -> (i32, i32) {
    %c0_i32 = arith.constant 0 : i32
    %c0_i32_0 = arith.constant 0 : i32
    return %c0_i32, %arg1 : i32, i32
  }
  func.func @transform_4(%arg0: i32, %arg1: i32) -> (i32, i32) {
    %c0_i32 = arith.constant 0 : i32
    %c0_i32_0 = arith.constant 0 : i32
    return %c0_i32, %arg1 : i32, i32
  }
  func.func @transform_5(%arg0: i32, %arg1: i32) -> (i32, i32) {
    %c0_i32 = arith.constant 0 : i32
    return %arg0, %arg1 : i32, i32
  }
}

module attributes {stable_mosaic.version = 11 : i64} {
  func.func @_matmul_scale_residual_kernel(%arg0: i32, %arg1: i32, %arg2: memref<10x128xbf16, #tpu.memory_space<vmem>>, %arg3: memref<128x32xbf16, #tpu.memory_space<vmem>>, %arg4: memref<1x32xf32, #tpu.memory_space<vmem>>, %arg5: memref<10x32xbf16, #tpu.memory_space<vmem>>, %arg6: memref<1x32xf32, #tpu.memory_space<vmem>>, %arg7: memref<10x32xbf16, #tpu.memory_space<vmem>>) attributes {dimension_semantics = [#tpu.dimension_semantics<parallel>, #tpu.dimension_semantics<parallel>], iteration_bounds = array<i64: 1, 1>, scalar_prefetch = 0 : i64, scratch_operands = 0 : i64, tpu.core_type = #tpu.core_type<tc>, window_params = [{transform_indices = @transform_0, window_bounds = array<i64: 10, 128>}, {transform_indices = @transform_1, window_bounds = array<i64: 128, 32>}, {transform_indices = @transform_2, window_bounds = array<i64: 1, 32>}, {transform_indices = @transform_3, window_bounds = array<i64: 10, 32>}, {transform_indices = @transform_4, window_bounds = array<i64: 1, 32>}, {transform_indices = @transform_5, window_bounds = array<i64: 10, 32>}]} {
    %c0 = arith.constant 0 : index
    %c0_0 = arith.constant 0 : index
    %0 = vector.load %arg2[%c0, %c0_0] : memref<10x128xbf16, #tpu.memory_space<vmem>>, vector<10x128xbf16>
    %c0_1 = arith.constant 0 : index
    %c0_2 = arith.constant 0 : index
    %1 = vector.load %arg3[%c0_1, %c0_2] : memref<128x32xbf16, #tpu.memory_space<vmem>>, vector<128x32xbf16>
    %cst = arith.constant dense<0.000000e+00> : vector<10x32xf32>
    %2 = tpu.matmul %0, %1, %cst {dimension_numbers = #tpu.dot_dimension_numbers<[1], [0], [0], [1], [0, 0, 1, 1], [], []>} : vector<10x128xbf16>, vector<128x32xbf16>, vector<10x32xf32> -> vector<10x32xf32>
    %c0_3 = arith.constant 0 : index
    %c0_4 = arith.constant 0 : index
    %3 = vector.load %arg4[%c0_3, %c0_4] : memref<1x32xf32, #tpu.memory_space<vmem>>, vector<1x32xf32>
    %4 = vector.broadcast %3 : vector<1x32xf32> to vector<10x32xf32>
    %5 = arith.addf %2, %4 : vector<10x32xf32>
    %c0_5 = arith.constant 0 : index
    %c0_6 = arith.constant 0 : index
    %6 = vector.load %arg5[%c0_5, %c0_6] : memref<10x32xbf16, #tpu.memory_space<vmem>>, vector<10x32xbf16>
    %7 = arith.extf %6 : vector<10x32xbf16> to vector<10x32xf32>
    %c0_7 = arith.constant 0 : index
    %c0_8 = arith.constant 0 : index
    %8 = vector.load %arg6[%c0_7, %c0_8] : memref<1x32xf32, #tpu.memory_space<vmem>>, vector<1x32xf32>
    %9 = vector.broadcast %8 : vector<1x32xf32> to vector<10x32xf32>
    %10 = arith.mulf %9, %5 : vector<10x32xf32>
    %11 = arith.addf %7, %10 : vector<10x32xf32>
    %12 = arith.truncf %11 : vector<10x32xf32> to vector<10x32xbf16>
    %c0_9 = arith.constant 0 : index
    %c0_10 = arith.constant 0 : index
    %13 = vector.load %arg7[%c0_9, %c0_10] : memref<10x32xbf16, #tpu.memory_space<vmem>>, vector<10x32xbf16>
    tpu.vector_store %arg7[%c0_9, %c0_10], %12 {strides = array<i32>} : memref<10x32xbf16, #tpu.memory_space<vmem>>, vector<10x32xbf16>,
    return
  }
  func.func @transform_0(%arg0: i32, %arg1: i32) -> (i32, i32) {
    %c0_i32 = arith.constant 0 : i32
    %c0_i32_0 = arith.constant 0 : i32
    return %arg0, %c0_i32 : i32, i32
  }
  func.func @transform_1(%arg0: i32, %arg1: i32) -> (i32, i32) {
    %c0_i32 = arith.constant 0 : i32
    %c0_i32_0 = arith.constant 0 : i32
    return %c0_i32, %arg1 : i32, i32
  }
  func.func @transform_2(%arg0: i32, %arg1: i32) -> (i32, i32) {
    %c0_i32 = arith.constant 0 : i32
    %c0_i32_0 = arith.constant 0 : i32
    return %c0_i32, %arg1 : i32, i32
  }
  func.func @transform_3(%arg0: i32, %arg1: i32) -> (i32, i32) {
    %c0_i32 = arith.constant 0 : i32
    return %arg0, %arg1 : i32, i32
  }
  func.func @transform_4(%arg0: i32, %arg1: i32) -> (i32, i32) {
    %c0_i32 = arith.constant 0 : i32
    %c0_i32_0 = arith.constant 0 : i32
    return %c0_i32, %arg1 : i32, i32
  }
  func.func @transform_5(%arg0: i32, %arg1: i32) -> (i32, i32) {
    %c0_i32 = arith.constant 0 : i32
    return %arg0, %arg1 : i32, i32
  }
}

module attributes {stable_mosaic.version = 11 : i64} {
  func.func @_layernorm_kernel(%arg0: i32, %arg1: memref<10x32xbf16, #tpu.memory_space<vmem>>, %arg2: memref<1x32xf32, #tpu.memory_space<vmem>>, %arg3: memref<1x32xf32, #tpu.memory_space<vmem>>, %arg4: memref<10x32xf32, #tpu.memory_space<vmem>>) attributes {dimension_semantics = [#tpu.dimension_semantics<parallel>], iteration_bounds = array<i64: 1>, scalar_prefetch = 0 : i64, scratch_operands = 0 : i64, tpu.core_type = #tpu.core_type<tc>, window_params = [{transform_indices = @transform_0, window_bounds = array<i64: 10, 32>}, {pipeline_mode = #tpu.pipeline_mode<synchronous>, transform_indices = @transform_1, window_bounds = array<i64: 1, 32>}, {pipeline_mode = #tpu.pipeline_mode<synchronous>, transform_indices = @transform_2, window_bounds = array<i64: 1, 32>}, {transform_indices = @transform_3, window_bounds = array<i64: 10, 32>}]} {
    %c0 = arith.constant 0 : index
    %c0_0 = arith.constant 0 : index
    %0 = vector.load %arg1[%c0, %c0_0] : memref<10x32xbf16, #tpu.memory_space<vmem>>, vector<10x32xbf16>
    %1 = arith.extf %0 : vector<10x32xbf16> to vector<10x32xf32>
    %cst = arith.constant dense<0.000000e+00> : vector<10xf32>
    %2 = vector.multi_reduction <add>, %1, %cst [1] : vector<10x32xf32> to vector<10xf32>
    %3 = vector.shape_cast %2 : vector<10xf32> to vector<10x1xf32>
    %cst_1 = arith.constant 3.200000e+01 : f32
    %4 = vector.broadcast %cst_1 : f32 to vector<10x1xf32>
    %5 = arith.divf %3, %4 : vector<10x1xf32>
    %6 = vector.broadcast %5 : vector<10x1xf32> to vector<10x32xf32>
    %7 = arith.subf %1, %6 : vector<10x32xf32>
    %8 = arith.mulf %7, %7 : vector<10x32xf32>
    %cst_2 = arith.constant dense<0.000000e+00> : vector<10xf32>
    %9 = vector.multi_reduction <add>, %8, %cst_2 [1] : vector<10x32xf32> to vector<10xf32>
    %10 = vector.shape_cast %9 : vector<10xf32> to vector<10x1xf32>
    %cst_3 = arith.constant 3.200000e+01 : f32
    %11 = vector.broadcast %cst_3 : f32 to vector<10x1xf32>
    %12 = arith.divf %10, %11 : vector<10x1xf32>
    %cst_4 = arith.constant 9.99999997E-7 : f32
    %13 = vector.broadcast %cst_4 : f32 to vector<10x1xf32>
    %14 = arith.addf %12, %13 : vector<10x1xf32>
    %15 = math.rsqrt %14 : vector<10x1xf32>
    %16 = vector.broadcast %15 : vector<10x1xf32> to vector<10x32xf32>
    %17 = arith.mulf %7, %16 : vector<10x32xf32>
    %c0_5 = arith.constant 0 : index
    %c0_6 = arith.constant 0 : index
    %18 = vector.load %arg2[%c0_5, %c0_6] : memref<1x32xf32, #tpu.memory_space<vmem>>, vector<1x32xf32>
    %19 = vector.broadcast %18 : vector<1x32xf32> to vector<10x32xf32>
    %20 = arith.mulf %17, %19 : vector<10x32xf32>
    %c0_7 = arith.constant 0 : index
    %c0_8 = arith.constant 0 : index
    %21 = vector.load %arg3[%c0_7, %c0_8] : memref<1x32xf32, #tpu.memory_space<vmem>>, vector<1x32xf32>
    %22 = vector.broadcast %21 : vector<1x32xf32> to vector<10x32xf32>
    %23 = arith.addf %20, %22 : vector<10x32xf32>
    %c0_9 = arith.constant 0 : index
    %c0_10 = arith.constant 0 : index
    %24 = vector.load %arg4[%c0_9, %c0_10] : memref<10x32xf32, #tpu.memory_space<vmem>>, vector<10x32xf32>
    tpu.vector_store %arg4[%c0_9, %c0_10], %23 {strides = array<i32>} : memref<10x32xf32, #tpu.memory_space<vmem>>, vector<10x32xf32>,
    return
  }
  func.func @transform_0(%arg0: i32) -> (i32, i32) {
    %c0_i32 = arith.constant 0 : i32
    %c0_i32_0 = arith.constant 0 : i32
    return %arg0, %c0_i32 : i32, i32
  }
  func.func @transform_1(%arg0: i32) -> (i32, i32) {
    %c0_i32 = arith.constant 0 : i32
    %c0_i32_0 = arith.constant 0 : i32
    %c0_i32_1 = arith.constant 0 : i32
    return %c0_i32, %c0_i32_0 : i32, i32
  }
  func.func @transform_2(%arg0: i32) -> (i32, i32) {
    %c0_i32 = arith.constant 0 : i32
    %c0_i32_0 = arith.constant 0 : i32
    %c0_i32_1 = arith.constant 0 : i32
    return %c0_i32, %c0_i32_0 : i32, i32
  }
  func.func @transform_3(%arg0: i32) -> (i32, i32) {
    %c0_i32 = arith.constant 0 : i32
    %c0_i32_0 = arith.constant 0 : i32
    return %arg0, %c0_i32 : i32, i32
  }
}

</mosaic_0001>

<llo_original>
// kernel: dinov2_forward.23
$region0: #{dinov2_forward.23}
  #allocation0 [shape = 'u32[]', space=smem, size = 0x4, offset = 0x4, fixed_abs, tag = 'smem constant byte address 0x4 - core index']
  #allocation1 [shape = 'u32[144,128]{1,0:T(1,128)}', space=vmem, size = 0x12000, scoped, tag = 'internal scratch']
  %s0 = inlined_call_operand.vmem [shape: bf16[8,192], index: 0, kind: input, shape index: {}]
  %s1 = inlined_call_operand.vmem [shape: bf16[192,32], index: 1, kind: input, shape index: {}]
  %s2 = inlined_call_operand.vmem [shape: f32[1,32], index: 2, kind: input, shape index: {}]
  %s3 = inlined_call_operand.vmem [shape: bf16[8,32], index: 3, kind: output, shape index: {}]
  %s4 = sld [smem:[#allocation0]]
  $region22: #{dinov2_forward.23} parent=0
    _
  %s6 = ssub.s32 1, %s4
  %s7 = scalar_select 0, %s6, %s4
  // Predicated region
  $region2: #{dinov2_forward.23} parent=0 // pred_check
    _
  $region3: #{dinov2_forward.23} parent=0 // pred_check_branch
    %9 = sbr.rel (0) target = $region5
  $region4: #{dinov2_forward.23} parent=0 // pred_region
    _
  $region5: #{dinov2_forward.23} parent=0 // pred_fallthru
    _
  // Predicated region
  $region6: #{dinov2_forward.23} parent=0 // pred_check
    _
  $region7: #{dinov2_forward.23} parent=0 // pred_check_branch
    %11 = sbr.rel (0) target = $region9
  $region8: #{dinov2_forward.23} parent=0 // pred_region
    _
  $region9: #{dinov2_forward.23} parent=0 // pred_fallthru
    _
  // Predicated region
  $region10: #{dinov2_forward.23} parent=0 // pred_check
    _
  $region11: #{dinov2_forward.23} parent=0 // pred_check_branch
    %13 = sbr.rel (0) target = $region13
  $region12: #{dinov2_forward.23} parent=0 // pred_region
    _
  $region13: #{dinov2_forward.23} parent=0 // pred_fallthru
    _
  %v15 = vld [vmem:[%s0] sm:$0xff]
  %v16 = vld [vmem:[%s1] sm:$0xf]
  %v17 = vld [vmem:[%s1 + $0x4] sm:$0xf]
  %v18 = vld [vmem:[%s1 + $0x8] sm:$0xf]
  %v19 = vld [vmem:[%s1 + $0xc] sm:$0xf]
  %v20 = vld [vmem:[%s1 + $0x10] sm:$0xf]
  %v21 = vld [vmem:[%s1 + $0x14] sm:$0xf]
  %v22 = vld [vmem:[%s1 + $0x18] sm:$0xf]
  %v23 = vld [vmem:[%s1 + $0x1c] sm:$0xf]
  %v24 = vld [vmem:[%s1 + $0x20] sm:$0xf]
  %v25 = vld [vmem:[%s1 + $0x24] sm:$0xf]
  %v26 = vld [vmem:[%s1 + $0x28] sm:$0xf]
  %v27 = vld [vmem:[%s1 + $0x2c] sm:$0xf]
  %v28 = vld [vmem:[%s1 + $0x30] sm:$0xf]
  %v29 = vld [vmem:[%s1 + $0x34] sm:$0xf]
  %v30 = vld [vmem:[%s1 + $0x38] sm:$0xf]
  %v31 = vld [vmem:[%s1 + $0x3c] sm:$0xf]
  %v32 = vld [vmem:[%s1 + $0x40] sm:$0xf]
  %v33 = vld [vmem:[%s1 + $0x44] sm:$0xf]
  %v34 = vld [vmem:[%s1 + $0x48] sm:$0xf]
  %v35 = vld [vmem:[%s1 + $0x4c] sm:$0xf]
  %v36 = vld [vmem:[%s1 + $0x50] sm:$0xf]
  %v37 = vld [vmem:[%s1 + $0x54] sm:$0xf]
  %v38 = vld [vmem:[%s1 + $0x58] sm:$0xf]
  %v39 = vld [vmem:[%s1 + $0x5c] sm:$0xf]
  %v40 = vld [vmem:[%s2] sm:$0x1]
  %v42 = vlaneseq
  %v43 = vshrl.u32 %v42, 7
  %v44 = vsub.s32 0, %v43
  %v45 = vrot.slane %v40, %v44
  %v48 = vunpack.c.l.b16 %v15
  %v49 = vunpack.c.h.b16 %v15
  %v50 = vpack.c.b16 %v48, %v48
  %v51 = vpack.c.b16 %v49, %v49
  %v77 = vunpack.c.l.b16 %v16
  %v78 = vunpack.c.l.b16 %v17
  %v79 = vunpack.c.l.b16 %v18
  %v80 = vunpack.c.l.b16 %v19
  %v81 = vunpack.c.l.b16 %v20
  %v82 = vunpack.c.l.b16 %v21
  %v83 = vunpack.c.l.b16 %v22
  %v84 = vunpack.c.l.b16 %v23
  %v85 = vunpack.c.l.b16 %v24
  %v86 = vunpack.c.l.b16 %v25
  %v87 = vunpack.c.l.b16 %v26
  %v88 = vunpack.c.l.b16 %v27
  %v89 = vunpack.c.l.b16 %v28
  %v90 = vunpack.c.l.b16 %v29
  %v91 = vunpack.c.l.b16 %v30
  %v92 = vunpack.c.l.b16 %v31
  %v93 = vunpack.c.l.b16 %v32
  %v94 = vunpack.c.l.b16 %v33
  %v95 = vunpack.c.l.b16 %v34
  %v96 = vunpack.c.l.b16 %v35
  %v97 = vunpack.c.l.b16 %v36
  %v98 = vunpack.c.l.b16 %v37
  %v99 = vunpack.c.l.b16 %v38
  %v100 = vunpack.c.l.b16 %v39
  %v101 = vpack.c.b16 %v78, %v77
  %v102 = vpack.c.b16 %v80, %v79
  %v103 = vpack.c.b16 %v82, %v81
  %v104 = vpack.c.b16 %v84, %v83
  %v105 = vpack.c.b16 %v86, %v85
  %v106 = vpack.c.b16 %v88, %v87
  %v107 = vpack.c.b16 %v90, %v89
  %v108 = vpack.c.b16 %v92, %v91
  %v109 = vpack.c.b16 %v94, %v93
  %v110 = vpack.c.b16 %v96, %v95
  %v111 = vpack.c.b16 %v98, %v97
  %v112 = vpack.c.b16 %v100, %v99
  %vm125 = vcmask 523264
  %v127 = vsel %vm125, %v51, 0
  %129 = vmatprep.subr.bf16.mxu0 0
  %130 = vmatpush1.bf16.msra.mxu0 %v101
  %131 = vmatprep.subr.bf16.mxu0 0
  %132 = vmatpush1.bf16.msra.mxu0 %v102
  %133 = vmatprep.subr.bf16.mxu0 0
  %134 = vmatpush1.bf16.msra.mxu0 %v103
  %135 = vmatprep.subr.bf16.mxu0 0
  %136 = vmatpush1.bf16.msra.mxu0 %v104
  %137 = vmatprep.subr.bf16.mxu0 0
  %138 = vmatpush1.bf16.msra.mxu0 %v105
  %139 = vmatprep.subr.bf16.mxu0 0
  %140 = vmatpush1.bf16.msra.mxu0 %v106
  %141 = vmatprep.subr.bf16.mxu0 0
  %142 = vmatpush1.bf16.msra.mxu0 %v107
  %143 = vmatprep.subr.bf16.mxu0 0
  %144 = vmatpush1.bf16.msra.mxu0 %v108
  %145 = vmatprep.subr.bf16.mxu0 0
  %146 = vmatpush1.bf16.msra.mxu0 %v109
  %147 = vmatprep.subr.bf16.mxu0 0
  %148 = vmatpush1.bf16.msra.mxu0 %v110
  %149 = vmatprep.subr.bf16.mxu0 0
  %150 = vmatpush1.bf16.msra.mxu0 %v111
  %151 = vmatprep.subr.bf16.mxu0 0
  %152 = vmatpush1.bf16.msra.mxu0 %v112
  %153 = vmatprep.subr.bf16.mxu0 0
  %154 = vmatpush1.bf16.msra.mxu0 0
  %155 = vmatprep.subr.bf16.mxu0 0
  %156 = vmatpush1.bf16.msra.mxu0 0
  %157 = vmatprep.subr.bf16.mxu0 0
  %158 = vmatpush1.bf16.msra.mxu0 0
  %159 = vmatprep.subr.bf16.mxu0 0
  %160 = vmatpush1.bf16.msra.mxu0 0
  %161 = vmatprep.mubr.bf16.mxu0 %v127
  %162 = vmatmul.mubr.bf16.gmra.mrb[0].mxu0 %v50
  %v163 = vpop.f32.mrb[0].mxu0
  %v164 = vadd.f32 %v45, %v163
  %v165 = vpop.f32.mrb[0].mxu0
  %v166 = vpop.f32.mrb[0].mxu0
  %v167 = vpop.f32.mrb[0].mxu0
  %168 = vdwg.mxu0
  %v169 = vpack.c.bf16 %v164, %v164
  %vm170 = vcmask 257024
  %171 = vst.msk [vmem:[%s3] sm:$0xf] %vm170, %v169
  // Predicated region
  $region14: #{dinov2_forward.23} parent=0 // pred_check
    _
  $region15: #{dinov2_forward.23} parent=0 // pred_check_branch
    %173 = sbr.rel (0) target = $region17
  $region16: #{dinov2_forward.23} parent=0 // pred_region
    _
  $region17: #{dinov2_forward.23} parent=0 // pred_fallthru
    _
  // Predicated region
  $region18: #{dinov2_forward.23} parent=0 // pred_check
    _
  $region19: #{dinov2_forward.23} parent=0 // pred_check_branch
    %175 = sbr.rel (0) target = $region21
  $region20: #{dinov2_forward.23} parent=0 // pred_region
    _
  $region21: #{dinov2_forward.23} parent=0 // pred_fallthru
    _

// kernel: dinov2_forward.25
$region0: #{dinov2_forward.25}
  #allocation0 [shape = 'u32[]', space=smem, size = 0x4, offset = 0x4, fixed_abs, tag = 'smem constant byte address 0x4 - core index']
  #allocation1 [shape = 'u32[144,128]{1,0:T(1,128)}', space=vmem, size = 0x12000, scoped, tag = 'internal scratch']
  %s0 = inlined_call_operand.vmem [shape: bf16[2,5,96], index: 0, kind: input, shape index: {}]
  %s1 = inlined_call_operand.vmem [shape: bf16[2,5,32], index: 1, kind: output, shape index: {}]
  %s2 = sld [smem:[#allocation0]]
  $region37: #{dinov2_forward.25} parent=0
    _
  %s4 = ssub.s32 1, %s2
  %s5 = scalar_select 0, %s4, %s2
  loop: start=0, step=1, limit=4
  $region2: #{dinov2_forward.25} parent=0 // loop_pre_header
    _
  $region3: #{dinov2_forward.25} parent=0 // loop_header
    %s7 = sphi 0, %s11
    %p8 = scmp.ge.s32.totalorder %s7, 4
    %s17 = sphi 0, %s19
    %s20 = sphi 0, %s17
    %s21 = sphi 0, %s20
    %s37 = sphi 0, %s21
    %s43 = sphi 0, %s45
    %s46 = sphi 0, %s43
    %s47 = sphi 0, %s46
    %s63 = sphi 0, %s47
  $region4: #{dinov2_forward.25} parent=0 // loop_header_branch
    %10 = sbr.rel (%p8) target = $region8
  $region5: #{dinov2_forward.25} parent=0 // loop_body
    %s12 = ssub.s32 %s7, 1
    %s13 = ssub.s32 %s7, 2
    %s14 = sadd.s32 %s7, 1
    %s15 = ssub.s32 %s7, %s14
    %p16 = scmp.eq.s32.totalorder %s15, 0
    %s18 = sadd.s32 %s17, 1
    %s19 = scalar_select %p16, %s17, %s18
    %p22 = pneg %p16
    %p23 = scmp.eq.s32.totalorder %s7, 1
    %p24 = por %p22, %p23
    %p25 = scmp.ne.s32.totalorder %s17, %s20
    %p26 = scmp.eq.s32.totalorder %s7, 0
    %p27 = por %p25, %p26
    %p28 = scmp.ne.s32.totalorder %s17, %s20
    %p29 = scmp.eq.s32.totalorder %s12, 1
    %p30 = por %p28, %p29
    %p31 = scmp.ne.s32.totalorder %s20, %s21
    %p32 = scmp.eq.s32.totalorder %s12, 0
    %p33 = por %p31, %p32
    %p34 = scmp.ne.s32.totalorder %s20, %s21
    %p35 = scmp.eq.s32.totalorder %s13, 1
    %p36 = por %p34, %p35
    %p38 = scmp.ne.s32.totalorder %s21, %s37
    %p39 = scmp.eq.s32.totalorder %s13, 0
    %p40 = por %p38, %p39
    %s41 = ssub.s32 %s7, %s14
    %p42 = scmp.eq.s32.totalorder %s41, 0
    %s44 = sadd.s32 %s43, 1
    %s45 = scalar_select %p42, %s43, %s44
    %p48 = pneg %p42
    %p49 = scmp.eq.s32.totalorder %s7, 1
    %p50 = por %p48, %p49
    %p51 = scmp.ne.s32.totalorder %s43, %s46
    %p52 = scmp.eq.s32.totalorder %s7, 0
    %p53 = por %p51, %p52
    %p54 = scmp.ne.s32.totalorder %s43, %s46
    %p55 = scmp.eq.s32.totalorder %s12, 1
    %p56 = por %p54, %p55
    %p57 = scmp.ne.s32.totalorder %s46, %s47
    %p58 = scmp.eq.s32.totalorder %s12, 0
    %p59 = por %p57, %p58
    %p60 = scmp.ne.s32.totalorder %s46, %s47
    %p61 = scmp.eq.s32.totalorder %s13, 1
    %p62 = por %p60, %p61
    %p64 = scmp.ne.s32.totalorder %s47, %s63
    %p65 = scmp.eq.s32.totalorder %s13, 0
    %p66 = por %p64, %p65
    %p67 = scmp.le.s32.totalorder 1, %s7
    %p68 = scmp.lt.s32.totalorder %s7, 3
    %p69 = pnand %p67, %p68
    %p70 = pneg %p69
    // Predicated region
    $region9: #{dinov2_forward.25} parent=5 // pred_check
      _
    $region10: #{dinov2_forward.25} parent=5 // pred_check_branch
      %72 = sbr.rel (%p69) target = $region12
    $region11: #{dinov2_forward.25} parent=5 // pred_region
      %s73 = ssub.s32 %s7, 1
    $region12: #{dinov2_forward.25} parent=5 // pred_fallthru
      _
    %p74 = scmp.lt.s32.totalorder %s7, 2
    // Predicated region
    $region13: #{dinov2_forward.25} parent=5 // pred_check
      %p75 = pneg %p74
    $region14: #{dinov2_forward.25} parent=5 // pred_check_branch
      %77 = sbr.rel (%p75) target = $region16
    $region15: #{dinov2_forward.25} parent=5 // pred_region
      // Predicated region
      $region17: #{dinov2_forward.25} parent=15 // pred_check
        %p78 = pneg %p27
      $region18: #{dinov2_forward.25} parent=15 // pred_check_branch
        %80 = sbr.rel (%p78) target = $region20
      $region19: #{dinov2_forward.25} parent=15 // pred_region
        %p81 = scmp.lt.s32.totalorder %s7, 1
        %s82 = scalar_select %p81, %s7, 1
        %s83 = smul.addr %s82, 4
        %s84 = scalar_lea.vmem %s0, %s83
      $region20: #{dinov2_forward.25} parent=15 // pred_fallthru
        _
    $region16: #{dinov2_forward.25} parent=5 // pred_fallthru
      _
    %p85 = scmp.le.s32.totalorder 1, %s7
    %p86 = scmp.lt.s32.totalorder %s7, 3
    %p87 = pnand %p85, %p86
    %p88 = pneg %p87
    // Predicated region
    $region21: #{dinov2_forward.25} parent=5 // pred_check
      _
    $region22: #{dinov2_forward.25} parent=5 // pred_check_branch
      %90 = sbr.rel (%p87) target = $region24
    $region23: #{dinov2_forward.25} parent=5 // pred_region
      %s91 = ssub.s32 %s7, 1
      %p92 = scmp.lt.s32.totalorder %s12, 1
      %s93 = scalar_select %p92, %s12, 1
      %s94 = smul.addr %s93, 4
      %s95 = scalar_lea.vmem %s0, %s94
      %p96 = pneg %p33
      %p97 = pneg %p30
      %p98 = pneg %p59
      %p99 = pneg %p56
      %p100 = scmp.lt.s32.totalorder %s12, 1
      %s101 = scalar_select %p100, %s12, 1
      %s102 = smul.addr %s101, 4
      %s103 = scalar_lea.vmem %s1, %s102
      %p104 = scmp.lt.s32.totalorder %s12, 1
      %s105 = scalar_select %p104, %s12, 1
      %s106 = smul.addr %s105, 4
      %s107 = scalar_lea.vmem %s0, %s106
      %p108 = scmp.lt.s32.totalorder %s12, 1
      %s109 = scalar_select %p108, %s12, 1
      %s110 = smul.addr %s109, 4
      %s111 = scalar_lea.vmem %s1, %s110
      %v113 = vld [vmem:[%s107] sm:$0x7]
      %v115 = vunpack.c.l.b16 %v113
      %v116 = vpack.c.b16 %v115, %v115
      %117 = vrot.lane.b32.xlu0 %v116, 96
      %v118 = vpop.permute.xlu0 %117
      %vm119 = vcmask 130048
      %v121 = vsel %vm119, %v113, 0
      %v124 = vsel %vm119, %v118, 0
      %126 = vmatprep.subr.bf16.mxu0 0
      %127 = vmatpush1.bf16.xpose.msra.mxu0 %v124
      %128 = vmatprep.subr.bf16.mxu0 0
      %129 = vmatpush1.bf16.xpose.msra.mxu0 0
      %130 = vmatprep.subr.bf16.mxu0 0
      %131 = vmatpush1.bf16.xpose.msra.mxu0 0
      %132 = vmatprep.subr.bf16.mxu0 0
      %133 = vmatpush1.bf16.xpose.msra.mxu0 0
      %134 = vmatprep.subr.bf16.mxu0 0
      %135 = vmatpush1.bf16.xpose.msra.mxu0 0
      %136 = vmatprep.subr.bf16.mxu0 0
      %137 = vmatpush1.bf16.xpose.msra.mxu0 0
      %138 = vmatprep.subr.bf16.mxu0 0
      %139 = vmatpush1.bf16.xpose.msra.mxu0 0
      %140 = vmatprep.subr.bf16.mxu0 0
      %141 = vmatpush1.bf16.xpose.msra.mxu0 0
      %142 = vmatprep.subr.bf16.mxu0 0
      %143 = vmatpush1.bf16.xpose.msra.mxu0 0
      %144 = vmatprep.subr.bf16.mxu0 0
      %145 = vmatpush1.bf16.xpose.msra.mxu0 0
      %146 = vmatprep.subr.bf16.mxu0 0
      %147 = vmatpush1.bf16.xpose.msra.mxu0 0
      %148 = vmatprep.subr.bf16.mxu0 0
      %149 = vmatpush1.bf16.xpose.msra.mxu0 0
      %150 = vmatprep.subr.bf16.mxu0 0
      %151 = vmatpush1.bf16.xpose.msra.mxu0 0
      %152 = vmatprep.subr.bf16.mxu0 0
      %153 = vmatpush1.bf16.xpose.msra.mxu0 0
      %154 = vmatprep.subr.bf16.mxu0 0
      %155 = vmatpush1.bf16.xpose.msra.mxu0 0
      %156 = vmatprep.subr.bf16.mxu0 0
      %157 = vmatpush1.bf16.xpose.msra.mxu0 0
      %158 = vmatprep.mubr.bf16.mxu0 0
      %159 = vmatmul.mubr.bf16.gmra.mrb[0].mxu0 %v121
      %v160 = vpop.f32.mrb[0].mxu0
      %v161 = vadd.f32 0.0, %v160
      %v162 = vpop.f32.mrb[0].mxu0
      %v163 = vpop.f32.mrb[0].mxu0
      %v164 = vpop.f32.mrb[0].mxu0
      %165 = vdwg.mxu0
      %v166 = vmul.f32 %v161, 0.25
      %vm167 = vcmask 36864
      %v168 = vsel %vm167, %v166, -inf
      %169 = vmax.xlane.f32.xlu0 %v168
      %v170 = vpop.xlane.xlu0 %169
      %v171 = vsub.f32 %v166, %v170
      %v172 = vmul.f32 %v171, 1.442695
      %v173 = vpow.pop %v172
      %v174 = vsel %vm167, %v173, 0.0
      %175 = vadd.xlane.f32.xlu0 %v174
      %v176 = vpop.xlane.xlu0 %175
      %v177 = vrcp.pop %v176
      %v178 = vmul.f32 %v173, %v177
      %v179 = vpack.c.bf16 %v178, %v178
      %180 = vrot.lane.b32.xlu0 %v116, 64
      %v181 = vpop.permute.xlu0 %180
      %vm182 = vcmask 39936
      %v184 = vsel %vm182, %v179, 0
      %vm186 = vcmask 1041408
      %vm187 = vcmask 1042432
      %v188 = vsel %vm186, 4294967295, 65535
      %v189 = vsel %vm187, %v188, 0
      %v191 = vand.u32 %v181, %v189
      %193 = vmatprep.subr.bf16.mxu0 0
      %194 = vmatpush1.bf16.msra.mxu0 %v191
      %195 = vmatprep.subr.bf16.mxu0 0
      %196 = vmatpush1.bf16.msra.mxu0 0
      %197 = vmatprep.subr.bf16.mxu0 0
      %198 = vmatpush1.bf16.msra.mxu0 0
      %199 = vmatprep.subr.bf16.mxu0 0
      %200 = vmatpush1.bf16.msra.mxu0 0
      %201 = vmatprep.subr.bf16.mxu0 0
      %202 = vmatpush1.bf16.msra.mxu0 0
      %203 = vmatprep.subr.bf16.mxu0 0
      %204 = vmatpush1.bf16.msra.mxu0 0
      %205 = vmatprep.subr.bf16.mxu0 0
      %206 = vmatpush1.bf16.msra.mxu0 0
      %207 = vmatprep.subr.bf16.mxu0 0
      %208 = vmatpush1.bf16.msra.mxu0 0
      %209 = vmatprep.subr.bf16.mxu0 0
      %210 = vmatpush1.bf16.msra.mxu0 0
      %211 = vmatprep.subr.bf16.mxu0 0
      %212 = vmatpush1.bf16.msra.mxu0 0
      %213 = vmatprep.subr.bf16.mxu0 0
      %214 = vmatpush1.bf16.msra.mxu0 0
      %215 = vmatprep.subr.bf16.mxu0 0
      %216 = vmatpush1.bf16.msra.mxu0 0
      %217 = vmatprep.subr.bf16.mxu0 0
      %218 = vmatpush1.bf16.msra.mxu0 0
      %219 = vmatprep.subr.bf16.mxu0 0
      %220 = vmatpush1.bf16.msra.mxu0 0
      %221 = vmatprep.subr.bf16.mxu0 0
      %222 = vmatpush1.bf16.msra.mxu0 0
      %223 = vmatprep.subr.bf16.mxu0 0
      %224 = vmatpush1.bf16.msra.mxu0 0
      %225 = vmatprep.mubr.bf16.mxu0 0
      %226 = vmatmul.mubr.bf16.gmra.mrb[0].mxu0 %v184
      %v227 = vpop.f32.mrb[0].mxu0
      %v228 = vadd.f32 0.0, %v227
      %v229 = vpop.f32.mrb[0].mxu0
      %v230 = vpop.f32.mrb[0].mxu0
      %v231 = vpop.f32.mrb[0].mxu0
      %232 = vdwg.mxu0
      %233 = vrot.lane.b32.xlu0 %v116, 112
      %v234 = vpop.permute.xlu0 %233
      %235 = vrot.lane.b32.xlu0 %v116, 80
      %v236 = vpop.permute.xlu0 %235
      %v238 = vsel %vm119, %v234, 0
      %v241 = vsel %vm119, %v236, 0
      %243 = vmatprep.subr.bf16.mxu0 0
      %244 = vmatpush1.bf16.xpose.msra.mxu0 %v241
      %245 = vmatprep.subr.bf16.mxu0 0
      %246 = vmatpush1.bf16.xpose.msra.mxu0 0
      %247 = vmatprep.subr.bf16.mxu0 0
      %248 = vmatpush1.bf16.xpose.msra.mxu0 0
      %249 = vmatprep.subr.bf16.mxu0 0
      %250 = vmatpush1.bf16.xpose.msra.mxu0 0
      %251 = vmatprep.subr.bf16.mxu0 0
      %252 = vmatpush1.bf16.xpose.msra.mxu0 0
      %253 = vmatprep.subr.bf16.mxu0 0
      %254 = vmatpush1.bf16.xpose.msra.mxu0 0
      %255 = vmatprep.subr.bf16.mxu0 0
      %256 = vmatpush1.bf16.xpose.msra.mxu0 0
      %257 = vmatprep.subr.bf16.mxu0 0
      %258 = vmatpush1.bf16.xpose.msra.mxu0 0
      %259 = vmatprep.subr.bf16.mxu0 0
      %260 = vmatpush1.bf16.xpose.msra.mxu0 0
      %261 = vmatprep.subr.bf16.mxu0 0
      %262 = vmatpush1.bf16.xpose.msra.mxu0 0
      %263 = vmatprep.subr.bf16.mxu0 0
      %264 = vmatpush1.bf16.xpose.msra.mxu0 0
      %265 = vmatprep.subr.bf16.mxu0 0
      %266 = vmatpush1.bf16.xpose.msra.mxu0 0
      %267 = vmatprep.subr.bf16.mxu0 0
      %268 = vmatpush1.bf16.xpose.msra.mxu0 0
      %269 = vmatprep.subr.bf16.mxu0 0
      %270 = vmatpush1.bf16.xpose.msra.mxu0 0
      %271 = vmatprep.subr.bf16.mxu0 0
      %272 = vmatpush1.bf16.xpose.msra.mxu0 0
      %273 = vmatprep.subr.bf16.mxu0 0
      %274 = vmatpush1.bf16.xpose.msra.mxu0 0
      %275 = vmatprep.mubr.bf16.mxu0 0
      %276 = vmatmul.mubr.bf16.gmra.mrb[0].mxu0 %v238
      %v277 = vpop.f32.mrb[0].mxu0
      %v278 = vadd.f32 0.0, %v277
      %v279 = vpop.f32.mrb[0].mxu0
      %v280 = vpop.f32.mrb[0].mxu0
      %v281 = vpop.f32.mrb[0].mxu0
      %282 = vdwg.mxu0
      %v283 = vmul.f32 %v278, 0.25
      %v284 = vsel %vm167, %v283, -inf
      %285 = vmax.xlane.f32.xlu0 %v284
      %v286 = vpop.xlane.xlu0 %285
      %v287 = vsub.f32 %v283, %v286
      %v288 = vmul.f32 %v287, 1.442695
      %v289 = vpow.pop %v288
      %v290 = vsel %vm167, %v289, 0.0
      %291 = vadd.xlane.f32.xlu0 %v290
      %v292 = vpop.xlane.xlu0 %291
      %v293 = vrcp.pop %v292
      %v294 = vmul.f32 %v289, %v293
      %v295 = vpack.c.bf16 %v294, %v294
      %296 = vrot.lane.b32.xlu0 %v116, 48
      %v297 = vpop.permute.xlu0 %296
      %v299 = vsel %vm182, %v295, 0
      %v302 = vand.u32 %v297, %v189
      %304 = vmatprep.subr.bf16.mxu0 0
      %305 = vmatpush1.bf16.msra.mxu0 %v302
      %306 = vmatprep.subr.bf16.mxu0 0
      %307 = vmatpush1.bf16.msra.mxu0 0
      %308 = vmatprep.subr.bf16.mxu0 0
      %309 = vmatpush1.bf16.msra.mxu0 0
      %310 = vmatprep.subr.bf16.mxu0 0
      %311 = vmatpush1.bf16.msra.mxu0 0
      %312 = vmatprep.subr.bf16.mxu0 0
      %313 = vmatpush1.bf16.msra.mxu0 0
      %314 = vmatprep.subr.bf16.mxu0 0
      %315 = vmatpush1.bf16.msra.mxu0 0
      %316 = vmatprep.subr.bf16.mxu0 0
      %317 = vmatpush1.bf16.msra.mxu0 0
      %318 = vmatprep.subr.bf16.mxu0 0
      %319 = vmatpush1.bf16.msra.mxu0 0
      %320 = vmatprep.subr.bf16.mxu0 0
      %321 = vmatpush1.bf16.msra.mxu0 0
      %322 = vmatprep.subr.bf16.mxu0 0
      %323 = vmatpush1.bf16.msra.mxu0 0
      %324 = vmatprep.subr.bf16.mxu0 0
      %325 = vmatpush1.bf16.msra.mxu0 0
      %326 = vmatprep.subr.bf16.mxu0 0
      %327 = vmatpush1.bf16.msra.mxu0 0
      %328 = vmatprep.subr.bf16.mxu0 0
      %329 = vmatpush1.bf16.msra.mxu0 0
      %330 = vmatprep.subr.bf16.mxu0 0
      %331 = vmatpush1.bf16.msra.mxu0 0
      %332 = vmatprep.subr.bf16.mxu0 0
      %333 = vmatpush1.bf16.msra.mxu0 0
      %334 = vmatprep.subr.bf16.mxu0 0
      %335 = vmatpush1.bf16.msra.mxu0 0
      %336 = vmatprep.mubr.bf16.mxu0 0
      %337 = vmatmul.mubr.bf16.gmra.mrb[0].mxu0 %v299
      %v338 = vpop.f32.mrb[0].mxu0
      %v339 = vadd.f32 0.0, %v338
      %v340 = vpop.f32.mrb[0].mxu0
      %v341 = vpop.f32.mrb[0].mxu0
      %v342 = vpop.f32.mrb[0].mxu0
      %343 = vdwg.mxu0
      %345 = vrot.lane.b32.xlu0 %v339, 16
      %v346 = vpop.permute.xlu0 %345
      %v348 = vsel %vm119, %v228, %v346
      %v349 = vpack.c.bf16 %v348, %v348
      %vm350 = vcmask 256000
      %vm351 = vsmask.f32 2304
      %vm352 = vmand %vm350, %vm351
      %v353 = vld [vmem:[%s111] sm:$0x7]
      %v354 = vsel %vm352, %v349, %v353
      %355 = vst [vmem:[%s111] sm:$0x7] %v354
      %p356 = scmp.lt.s32.totalorder %s12, 1
      %s357 = scalar_select %p356, %s12, 1
      %s358 = smul.addr %s357, 4
      %s359 = scalar_lea.vmem %s1, %s358
      // Predicated region
      $region25: #{dinov2_forward.25} parent=23 // pred_check
        %p360 = pneg %p56
      $region26: #{dinov2_forward.25} parent=23 // pred_check_branch
        %362 = sbr.rel (%p360) target = $region28
      $region27: #{dinov2_forward.25} parent=23 // pred_region
        _
      $region28: #{dinov2_forward.25} parent=23 // pred_fallthru
        _
    $region24: #{dinov2_forward.25} parent=5 // pred_fallthru
      _
    %p363 = scmp.le.s32.totalorder 2, %s7
    // Predicated region
    $region29: #{dinov2_forward.25} parent=5 // pred_check
      %p364 = pneg %p363
    $region30: #{dinov2_forward.25} parent=5 // pred_check_branch
      %366 = sbr.rel (%p364) target = $region32
    $region31: #{dinov2_forward.25} parent=5 // pred_region
      %s367 = ssub.s32 %s7, 2
      // Predicated region
      $region33: #{dinov2_forward.25} parent=31 // pred_check
        %p368 = pneg %p62
      $region34: #{dinov2_forward.25} parent=31 // pred_check_branch
        %370 = sbr.rel (%p368) target = $region36
      $region35: #{dinov2_forward.25} parent=31 // pred_region
        %p371 = scmp.lt.s32.totalorder %s13, 1
        %s372 = scalar_select %p371, %s13, 1
        %s373 = smul.addr %s372, 4
        %s374 = scalar_lea.vmem %s1, %s373
      $region36: #{dinov2_forward.25} parent=31 // pred_fallthru
        _
    $region32: #{dinov2_forward.25} parent=5 // pred_fallthru
      _
  $region6: #{dinov2_forward.25} parent=0 // loop_footer
    %s11 = sadd.s32 1, %s7
  $region7: #{dinov2_forward.25} parent=0 // loop_footer_branch
    %6 = sbr.rel target = $region3
  $region8: #{dinov2_forward.25} parent=0 // loop_exit
    _

// kernel: dinov2_forward.26
$region0: #{dinov2_forward.26}
  #allocation0 [shape = 'u32[]', space=smem, size = 0x4, offset = 0x4, fixed_abs, tag = 'smem constant byte address 0x4 - core index']
  #allocation1 [shape = 'u32[144,128]{1,0:T(1,128)}', space=vmem, size = 0x12000, scoped, tag = 'internal scratch']
  %s0 = inlined_call_operand.vmem [shape: bf16[10,32], index: 0, kind: input, shape index: {}]
  %s1 = inlined_call_operand.vmem [shape: bf16[32,32], index: 1, kind: input, shape index: {}]
  %s2 = inlined_call_operand.vmem [shape: f32[1,32], index: 2, kind: input, shape index: {}]
  %s3 = inlined_call_operand.vmem [shape: bf16[10,32], index: 3, kind: input, shape index: {}]
  %s4 = inlined_call_operand.vmem [shape: f32[1,32], index: 4, kind: input, shape index: {}]
  %s5 = inlined_call_operand.vmem [shape: bf16[10,32], index: 5, kind: output, shape index: {}]
  %s6 = sld [smem:[#allocation0]]
  $region30: #{dinov2_forward.26} parent=0
    _
  %s8 = ssub.s32 1, %s6
  %s9 = scalar_select 0, %s8, %s6
  // Predicated region
  $region2: #{dinov2_forward.26} parent=0 // pred_check
    _
  $region3: #{dinov2_forward.26} parent=0 // pred_check_branch
    %11 = sbr.rel (0) target = $region5
  $region4: #{dinov2_forward.26} parent=0 // pred_region
    _
  $region5: #{dinov2_forward.26} parent=0 // pred_fallthru
    _
  // Predicated region
  $region6: #{dinov2_forward.26} parent=0 // pred_check
    _
  $region7: #{dinov2_forward.26} parent=0 // pred_check_branch
    %13 = sbr.rel (0) target = $region9
  $region8: #{dinov2_forward.26} parent=0 // pred_region
    _
  $region9: #{dinov2_forward.26} parent=0 // pred_fallthru
    _
  // Predicated region
  $region10: #{dinov2_forward.26} parent=0 // pred_check
    _
  $region11: #{dinov2_forward.26} parent=0 // pred_check_branch
    %15 = sbr.rel (0) target = $region13
  $region12: #{dinov2_forward.26} parent=0 // pred_region
    _
  $region13: #{dinov2_forward.26} parent=0 // pred_fallthru
    _
  // Predicated region
  $region14: #{dinov2_forward.26} parent=0 // pred_check
    _
  $region15: #{dinov2_forward.26} parent=0 // pred_check_branch
    %17 = sbr.rel (0) target = $region17
  $region16: #{dinov2_forward.26} parent=0 // pred_region
    _
  $region17: #{dinov2_forward.26} parent=0 // pred_fallthru
    _
  // Predicated region
  $region18: #{dinov2_forward.26} parent=0 // pred_check
    _
  $region19: #{dinov2_forward.26} parent=0 // pred_check_branch
    %19 = sbr.rel (0) target = $region21
  $region20: #{dinov2_forward.26} parent=0 // pred_region
    _
  $region21: #{dinov2_forward.26} parent=0 // pred_fallthru
    _
  %v21 = vld [vmem:[%s0] sm:$0xf]
  %v22 = vld [vmem:[%s0 + $0x4] sm:$0x1]
  %v23 = vld [vmem:[%s1] sm:$0xf]
  %v24 = vld [vmem:[%s1 + $0x4] sm:$0xf]
  %v25 = vld [vmem:[%s1 + $0x8] sm:$0xf]
  %v26 = vld [vmem:[%s1 + $0xc] sm:$0xf]
  %v27 = vld [vmem:[%s2] sm:$0x1]
  %v29 = vlaneseq
  %v30 = vshrl.u32 %v29, 7
  %v31 = vsub.s32 0, %v30
  %v32 = vrot.slane %v27, %v31
  %v36 = vunpack.c.l.b16 %v21
  %v37 = vunpack.c.l.b16 %v22
  %v38 = vpack.c.b16 %v37, %v36
  %v43 = vunpack.c.l.b16 %v23
  %v44 = vunpack.c.l.b16 %v24
  %v45 = vunpack.c.l.b16 %v25
  %v46 = vunpack.c.l.b16 %v26
  %v47 = vpack.c.b16 %v44, %v43
  %v48 = vpack.c.b16 %v46, %v45
  %vm51 = vcmask 261120
  %v53 = vsel %vm51, %v38, 0
  %55 = vmatprep.subr.bf16.mxu0 0
  %56 = vmatpush1.bf16.msra.mxu0 %v47
  %57 = vmatprep.subr.bf16.mxu0 0
  %58 = vmatpush1.bf16.msra.mxu0 %v48
  %59 = vmatprep.subr.bf16.mxu0 0
  %60 = vmatpush1.bf16.msra.mxu0 0
  %61 = vmatprep.subr.bf16.mxu0 0
  %62 = vmatpush1.bf16.msra.mxu0 0
  %63 = vmatprep.subr.bf16.mxu0 0
  %64 = vmatpush1.bf16.msra.mxu0 0
  %65 = vmatprep.subr.bf16.mxu0 0
  %66 = vmatpush1.bf16.msra.mxu0 0
  %67 = vmatprep.subr.bf16.mxu0 0
  %68 = vmatpush1.bf16.msra.mxu0 0
  %69 = vmatprep.subr.bf16.mxu0 0
  %70 = vmatpush1.bf16.msra.mxu0 0
  %71 = vmatprep.subr.bf16.mxu0 0
  %72 = vmatpush1.bf16.msra.mxu0 0
  %73 = vmatprep.subr.bf16.mxu0 0
  %74 = vmatpush1.bf16.msra.mxu0 0
  %75 = vmatprep.subr.bf16.mxu0 0
  %76 = vmatpush1.bf16.msra.mxu0 0
  %77 = vmatprep.subr.bf16.mxu0 0
  %78 = vmatpush1.bf16.msra.mxu0 0
  %79 = vmatprep.subr.bf16.mxu0 0
  %80 = vmatpush1.bf16.msra.mxu0 0
  %81 = vmatprep.subr.bf16.mxu0 0
  %82 = vmatpush1.bf16.msra.mxu0 0
  %83 = vmatprep.subr.bf16.mxu0 0
  %84 = vmatpush1.bf16.msra.mxu0 0
  %85 = vmatprep.subr.bf16.mxu0 0
  %86 = vmatpush1.bf16.msra.mxu0 0
  %87 = vmatprep.mubr.bf16.mxu0 0
  %88 = vmatmul.mubr.bf16.gmra.mrb[0].mxu0 %v53
  %v89 = vpop.f32.mrb[0].mxu0
  %v90 = vadd.f32 %v32, %v89
  %v91 = vpop.f32.mrb[0].mxu0
  %v92 = vpop.f32.mrb[0].mxu0
  %v93 = vadd.f32 %v32, %v92
  %v94 = vpop.f32.mrb[0].mxu0
  %95 = vdwg.mxu0
  %v96 = vld [vmem:[%s3] sm:$0xf]
  %v97 = vld [vmem:[%s3 + $0x4] sm:$0x1]
  %v98 = vunpack.c.l.bf16 %v96
  %v99 = vunpack.c.l.bf16 %v97
  %v100 = vld [vmem:[%s4] sm:$0x1]
  %v102 = vlaneseq
  %v103 = vshrl.u32 %v102, 7
  %v104 = vsub.s32 0, %v103
  %v105 = vrot.slane %v100, %v104
  %v107 = vmul.f32 %v105, %v90
  %v108 = vmul.f32 %v105, %v93
  %v109 = vadd.f32 %v98, %v107
  %v110 = vadd.f32 %v99, %v108
  %v111 = vpack.c.bf16 %v110, %v109
  %v113 = vunpack.c.l.b16 %v111
  %v114 = vunpack.c.h.b16 %v111
  %v115 = vpack.c.b16 %v113, %v113
  %v116 = vpack.c.b16 %v114, %v114
  %vm119 = vcmask 257024
  %120 = vst.msk [vmem:[%s5] sm:$0xf] %vm119, %v115
  %vm121 = vcmask 253952
  %122 = vst.msk [vmem:[%s5 + $0x4] sm:$0x1] %vm121, %v116
  // Predicated region
  $region22: #{dinov2_forward.26} parent=0 // pred_check
    _
  $region23: #{dinov2_forward.26} parent=0 // pred_check_branch
    %124 = sbr.rel (0) target = $region25
  $region24: #{dinov2_forward.26} parent=0 // pred_region
    _
  $region25: #{dinov2_forward.26} parent=0 // pred_fallthru
    _
  // Predicated region
  $region26: #{dinov2_forward.26} parent=0 // pred_check
    _
  $region27: #{dinov2_forward.26} parent=0 // pred_check_branch
    %126 = sbr.rel (0) target = $region29
  $region28: #{dinov2_forward.26} parent=0 // pred_region
    _
  $region29: #{dinov2_forward.26} parent=0 // pred_fallthru
    _

// kernel: dinov2_forward.24
$region0: #{dinov2_forward.24}
  #allocation0 [shape = 'u32[]', space=smem, size = 0x4, offset = 0x4, fixed_abs, tag = 'smem constant byte address 0x4 - core index']
  #allocation1 [shape = 'u32[144,128]{1,0:T(1,128)}', space=vmem, size = 0x12000, scoped, tag = 'internal scratch']
  %s0 = inlined_call_operand.vmem [shape: bf16[10,32], index: 0, kind: input, shape index: {}]
  %s1 = inlined_call_operand.vmem [shape: f32[1,32], index: 1, kind: input, shape index: {}]
  %s2 = inlined_call_operand.vmem [shape: f32[1,32], index: 2, kind: input, shape index: {}]
  %s3 = inlined_call_operand.vmem [shape: bf16[32,96], index: 3, kind: input, shape index: {}]
  %s4 = inlined_call_operand.vmem [shape: f32[1,96], index: 4, kind: input, shape index: {}]
  %s5 = inlined_call_operand.vmem [shape: bf16[10,96], index: 5, kind: output, shape index: {}]
  %s6 = sld [smem:[#allocation0]]
  $region30: #{dinov2_forward.24} parent=0
    _
  %s8 = ssub.s32 1, %s6
  %s9 = scalar_select 0, %s8, %s6
  // Predicated region
  $region2: #{dinov2_forward.24} parent=0 // pred_check
    _
  $region3: #{dinov2_forward.24} parent=0 // pred_check_branch
    %11 = sbr.rel (0) target = $region5
  $region4: #{dinov2_forward.24} parent=0 // pred_region
    _
  $region5: #{dinov2_forward.24} parent=0 // pred_fallthru
    _
  // Predicated region
  $region6: #{dinov2_forward.24} parent=0 // pred_check
    _
  $region7: #{dinov2_forward.24} parent=0 // pred_check_branch
    %13 = sbr.rel (0) target = $region9
  $region8: #{dinov2_forward.24} parent=0 // pred_region
    _
  $region9: #{dinov2_forward.24} parent=0 // pred_fallthru
    _
  // Predicated region
  $region10: #{dinov2_forward.24} parent=0 // pred_check
    _
  $region11: #{dinov2_forward.24} parent=0 // pred_check_branch
    %15 = sbr.rel (0) target = $region13
  $region12: #{dinov2_forward.24} parent=0 // pred_region
    _
  $region13: #{dinov2_forward.24} parent=0 // pred_fallthru
    _
  // Predicated region
  $region14: #{dinov2_forward.24} parent=0 // pred_check
    _
  $region15: #{dinov2_forward.24} parent=0 // pred_check_branch
    %17 = sbr.rel (0) target = $region17
  $region16: #{dinov2_forward.24} parent=0 // pred_region
    _
  $region17: #{dinov2_forward.24} parent=0 // pred_fallthru
    _
  // Predicated region
  $region18: #{dinov2_forward.24} parent=0 // pred_check
    _
  $region19: #{dinov2_forward.24} parent=0 // pred_check_branch
    %19 = sbr.rel (0) target = $region21
  $region20: #{dinov2_forward.24} parent=0 // pred_region
    _
  $region21: #{dinov2_forward.24} parent=0 // pred_fallthru
    _
  %v21 = vld [vmem:[%s0] sm:$0xf]
  %v22 = vld [vmem:[%s0 + $0x4] sm:$0x1]
  %v23 = vunpack.c.l.bf16 %v21
  %v24 = vunpack.c.l.bf16 %v22
  %vm25 = vcmask 261120
  %v26 = vsel %vm25, %v23, 0.0
  %27 = vadd.xlane.f32.xlu0 %v26
  %v28 = vpop.xlane.xlu0 %27
  %vm29 = vcmask 254976
  %v30 = vsel %vm29, %v24, 0.0
  %31 = vadd.xlane.f32.xlu0 %v30
  %v32 = vpop.xlane.xlu0 %31
  %v33 = vrcp.pop 32.0
  %v34 = vmul.f32 %v28, %v33
  %v35 = vmul.f32 %v32, %v33
  %v36 = vsub.f32 %v23, %v34
  %v37 = vsub.f32 %v24, %v35
  %v38 = vmul.f32 %v36, %v36
  %v39 = vmul.f32 %v37, %v37
  %v40 = vsel %vm25, %v38, 0.0
  %41 = vadd.xlane.f32.xlu0 %v40
  %v42 = vpop.xlane.xlu0 %41
  %v43 = vsel %vm29, %v39, 0.0
  %44 = vadd.xlane.f32.xlu0 %v43
  %v45 = vpop.xlane.xlu0 %44
  %v46 = vmul.f32 %v42, %v33
  %v47 = vmul.f32 %v45, %v33
  %v48 = vadd.f32 %v46, 1e-06
  %v49 = vadd.f32 %v47, 1e-06
  %v50 = vrsqrt.pop %v48
  %v51 = vrsqrt.pop %v49
  %v52 = vmul.f32 %v36, %v50
  %v53 = vmul.f32 %v37, %v51
  %v54 = vld [vmem:[%s1] sm:$0x1]
  %v56 = vlaneseq
  %v57 = vshrl.u32 %v56, 7
  %v58 = vsub.s32 0, %v57
  %v59 = vrot.slane %v54, %v58
  %v61 = vmul.f32 %v52, %v59
  %v62 = vmul.f32 %v53, %v59
  %v63 = vld [vmem:[%s2] sm:$0x1]
  %v65 = vlaneseq
  %v66 = vshrl.u32 %v65, 7
  %v67 = vsub.s32 0, %v66
  %v68 = vrot.slane %v63, %v67
  %v70 = vadd.f32 %v61, %v68
  %v71 = vadd.f32 %v62, %v68
  %v72 = vpack.c.bf16 %v71, %v70
  %v73 = vld [vmem:[%s3] sm:$0xf]
  %v74 = vld [vmem:[%s3 + $0x4] sm:$0xf]
  %v75 = vld [vmem:[%s3 + $0x8] sm:$0xf]
  %v76 = vld [vmem:[%s3 + $0xc] sm:$0xf]
  %v77 = vld [vmem:[%s4] sm:$0x1]
  %v79 = vlaneseq
  %v80 = vshrl.u32 %v79, 7
  %v81 = vsub.s32 0, %v80
  %v82 = vrot.slane %v77, %v81
  %v88 = vunpack.c.l.b16 %v73
  %v89 = vunpack.c.l.b16 %v74
  %v90 = vunpack.c.l.b16 %v75
  %v91 = vunpack.c.l.b16 %v76
  %v92 = vpack.c.b16 %v89, %v88
  %v93 = vpack.c.b16 %v91, %v90
  %v97 = vsel %vm25, %v72, 0
  %99 = vmatprep.subr.bf16.mxu0 0
  %100 = vmatpush1.bf16.msra.mxu0 %v92
  %101 = vmatprep.subr.bf16.mxu0 0
  %102 = vmatpush1.bf16.msra.mxu0 %v93
  %103 = vmatprep.subr.bf16.mxu0 0
  %104 = vmatpush1.bf16.msra.mxu0 0
  %105 = vmatprep.subr.bf16.mxu0 0
  %106 = vmatpush1.bf16.msra.mxu0 0
  %107 = vmatprep.subr.bf16.mxu0 0
  %108 = vmatpush1.bf16.msra.mxu0 0
  %109 = vmatprep.subr.bf16.mxu0 0
  %110 = vmatpush1.bf16.msra.mxu0 0
  %111 = vmatprep.subr.bf16.mxu0 0
  %112 = vmatpush1.bf16.msra.mxu0 0
  %113 = vmatprep.subr.bf16.mxu0 0
  %114 = vmatpush1.bf16.msra.mxu0 0
  %115 = vmatprep.subr.bf16.mxu0 0
  %116 = vmatpush1.bf16.msra.mxu0 0
  %117 = vmatprep.subr.bf16.mxu0 0
  %118 = vmatpush1.bf16.msra.mxu0 0
  %119 = vmatprep.subr.bf16.mxu0 0
  %120 = vmatpush1.bf16.msra.mxu0 0
  %121 = vmatprep.subr.bf16.mxu0 0
  %122 = vmatpush1.bf16.msra.mxu0 0
  %123 = vmatprep.subr.bf16.mxu0 0
  %124 = vmatpush1.bf16.msra.mxu0 0
  %125 = vmatprep.subr.bf16.mxu0 0
  %126 = vmatpush1.bf16.msra.mxu0 0
  %127 = vmatprep.subr.bf16.mxu0 0
  %128 = vmatpush1.bf16.msra.mxu0 0
  %129 = vmatprep.subr.bf16.mxu0 0
  %130 = vmatpush1.bf16.msra.mxu0 0
  %131 = vmatprep.mubr.bf16.mxu0 0
  %132 = vmatmul.mubr.bf16.gmra.mrb[0].mxu0 %v97
  %v133 = vpop.f32.mrb[0].mxu0
  %v134 = vadd.f32 %v82, %v133
  %v135 = vpop.f32.mrb[0].mxu0
  %v136 = vpop.f32.mrb[0].mxu0
  %v137 = vadd.f32 %v82, %v136
  %v138 = vpop.f32.mrb[0].mxu0
  %139 = vdwg.mxu0
  %v140 = vpack.c.bf16 %v137, %v134
  %v142 = vunpack.c.l.b16 %v140
  %v143 = vunpack.c.h.b16 %v140
  %v144 = vpack.c.b16 %v142, %v142
  %v145 = vpack.c.b16 %v143, %v143
  %vm148 = vcmask 781312
  %149 = vst.msk [vmem:[%s5] sm:$0xf] %vm148, %v144
  %vm150 = vcmask 778240
  %151 = vst.msk [vmem:[%s5 + $0x4] sm:$0x1] %vm150, %v145
  // Predicated region
  $region22: #{dinov2_forward.24} parent=0 // pred_check
    _
  $region23: #{dinov2_forward.24} parent=0 // pred_check_branch
    %153 = sbr.rel (0) target = $region25
  $region24: #{dinov2_forward.24} parent=0 // pred_region
    _
  $region25: #{dinov2_forward.24} parent=0 // pred_fallthru
    _
  // Predicated region
  $region26: #{dinov2_forward.24} parent=0 // pred_check
    _
  $region27: #{dinov2_forward.24} parent=0 // pred_check_branch
    %155 = sbr.rel (0) target = $region29
  $region28: #{dinov2_forward.24} parent=0 // pred_region
    _
  $region29: #{dinov2_forward.24} parent=0 // pred_fallthru
    _

// kernel: dinov2_forward.27
$region0: #{dinov2_forward.27}
  #allocation0 [shape = 'u32[]', space=smem, size = 0x4, offset = 0x4, fixed_abs, tag = 'smem constant byte address 0x4 - core index']
  #allocation1 [shape = 'u32[144,128]{1,0:T(1,128)}', space=vmem, size = 0x12000, scoped, tag = 'internal scratch']
  %s0 = inlined_call_operand.vmem [shape: bf16[10,32], index: 0, kind: input, shape index: {}]
  %s1 = inlined_call_operand.vmem [shape: f32[1,32], index: 1, kind: input, shape index: {}]
  %s2 = inlined_call_operand.vmem [shape: f32[1,32], index: 2, kind: input, shape index: {}]
  %s3 = inlined_call_operand.vmem [shape: bf16[32,128], index: 3, kind: input, shape index: {}]
  %s4 = inlined_call_operand.vmem [shape: f32[1,128], index: 4, kind: input, shape index: {}]
  %s5 = inlined_call_operand.vmem [shape: bf16[10,128], index: 5, kind: output, shape index: {}]
  %s6 = sld [smem:[#allocation0]]
  $region30: #{dinov2_forward.27} parent=0
    _
  %s8 = ssub.s32 1, %s6
  %s9 = scalar_select 0, %s8, %s6
  // Predicated region
  $region2: #{dinov2_forward.27} parent=0 // pred_check
    _
  $region3: #{dinov2_forward.27} parent=0 // pred_check_branch
    %11 = sbr.rel (0) target = $region5
  $region4: #{dinov2_forward.27} parent=0 // pred_region
    _
  $region5: #{dinov2_forward.27} parent=0 // pred_fallthru
    _
  // Predicated region
  $region6: #{dinov2_forward.27} parent=0 // pred_check
    _
  $region7: #{dinov2_forward.27} parent=0 // pred_check_branch
    %13 = sbr.rel (0) target = $region9
  $region8: #{dinov2_forward.27} parent=0 // pred_region
    _
  $region9: #{dinov2_forward.27} parent=0 // pred_fallthru
    _
  // Predicated region
  $region10: #{dinov2_forward.27} parent=0 // pred_check
    _
  $region11: #{dinov2_forward.27} parent=0 // pred_check_branch
    %15 = sbr.rel (0) target = $region13
  $region12: #{dinov2_forward.27} parent=0 // pred_region
    _
  $region13: #{dinov2_forward.27} parent=0 // pred_fallthru
    _
  // Predicated region
  $region14: #{dinov2_forward.27} parent=0 // pred_check
    _
  $region15: #{dinov2_forward.27} parent=0 // pred_check_branch
    %17 = sbr.rel (0) target = $region17
  $region16: #{dinov2_forward.27} parent=0 // pred_region
    _
  $region17: #{dinov2_forward.27} parent=0 // pred_fallthru
    _
  // Predicated region
  $region18: #{dinov2_forward.27} parent=0 // pred_check
    _
  $region19: #{dinov2_forward.27} parent=0 // pred_check_branch
    %19 = sbr.rel (0) target = $region21
  $region20: #{dinov2_forward.27} parent=0 // pred_region
    _
  $region21: #{dinov2_forward.27} parent=0 // pred_fallthru
    _
  %v21 = vld [vmem:[%s0] sm:$0xf]
  %v22 = vld [vmem:[%s0 + $0x4] sm:$0x1]
  %v23 = vunpack.c.l.bf16 %v21
  %v24 = vunpack.c.l.bf16 %v22
  %vm25 = vcmask 261120
  %v26 = vsel %vm25, %v23, 0.0
  %27 = vadd.xlane.f32.xlu0 %v26
  %v28 = vpop.xlane.xlu0 %27
  %vm29 = vcmask 254976
  %v30 = vsel %vm29, %v24, 0.0
  %31 = vadd.xlane.f32.xlu0 %v30
  %v32 = vpop.xlane.xlu0 %31
  %v33 = vrcp.pop 32.0
  %v34 = vmul.f32 %v28, %v33
  %v35 = vmul.f32 %v32, %v33
  %v36 = vsub.f32 %v23, %v34
  %v37 = vsub.f32 %v24, %v35
  %v38 = vmul.f32 %v36, %v36
  %v39 = vmul.f32 %v37, %v37
  %v40 = vsel %vm25, %v38, 0.0
  %41 = vadd.xlane.f32.xlu0 %v40
  %v42 = vpop.xlane.xlu0 %41
  %v43 = vsel %vm29, %v39, 0.0
  %44 = vadd.xlane.f32.xlu0 %v43
  %v45 = vpop.xlane.xlu0 %44
  %v46 = vmul.f32 %v42, %v33
  %v47 = vmul.f32 %v45, %v33
  %v48 = vadd.f32 %v46, 1e-06
  %v49 = vadd.f32 %v47, 1e-06
  %v50 = vrsqrt.pop %v48
  %v51 = vrsqrt.pop %v49
  %v52 = vmul.f32 %v36, %v50
  %v53 = vmul.f32 %v37, %v51
  %v54 = vld [vmem:[%s1] sm:$0x1]
  %v56 = vlaneseq
  %v57 = vshrl.u32 %v56, 7
  %v58 = vsub.s32 0, %v57
  %v59 = vrot.slane %v54, %v58
  %v61 = vmul.f32 %v52, %v59
  %v62 = vmul.f32 %v53, %v59
  %v63 = vld [vmem:[%s2] sm:$0x1]
  %v65 = vlaneseq
  %v66 = vshrl.u32 %v65, 7
  %v67 = vsub.s32 0, %v66
  %v68 = vrot.slane %v63, %v67
  %v70 = vadd.f32 %v61, %v68
  %v71 = vadd.f32 %v62, %v68
  %v72 = vpack.c.bf16 %v71, %v70
  %v73 = vld [vmem:[%s3] sm:$0xf]
  %v74 = vld [vmem:[%s3 + $0x4] sm:$0xf]
  %v75 = vld [vmem:[%s3 + $0x8] sm:$0xf]
  %v76 = vld [vmem:[%s3 + $0xc] sm:$0xf]
  %v77 = vld [vmem:[%s4] sm:$0x1]
  %v79 = vlaneseq
  %v80 = vshrl.u32 %v79, 7
  %v81 = vsub.s32 0, %v80
  %v82 = vrot.slane %v77, %v81
  %v88 = vunpack.c.l.b16 %v73
  %v89 = vunpack.c.l.b16 %v74
  %v90 = vunpack.c.l.b16 %v75
  %v91 = vunpack.c.l.b16 %v76
  %v92 = vpack.c.b16 %v89, %v88
  %v93 = vpack.c.b16 %v91, %v90
  %v97 = vsel %vm25, %v72, 0
  %99 = vmatprep.subr.bf16.mxu0 0
  %100 = vmatpush1.bf16.msra.mxu0 %v92
  %101 = vmatprep.subr.bf16.mxu0 0
  %102 = vmatpush1.bf16.msra.mxu0 %v93
  %103 = vmatprep.subr.bf16.mxu0 0
  %104 = vmatpush1.bf16.msra.mxu0 0
  %105 = vmatprep.subr.bf16.mxu0 0
  %106 = vmatpush1.bf16.msra.mxu0 0
  %107 = vmatprep.subr.bf16.mxu0 0
  %108 = vmatpush1.bf16.msra.mxu0 0
  %109 = vmatprep.subr.bf16.mxu0 0
  %110 = vmatpush1.bf16.msra.mxu0 0
  %111 = vmatprep.subr.bf16.mxu0 0
  %112 = vmatpush1.bf16.msra.mxu0 0
  %113 = vmatprep.subr.bf16.mxu0 0
  %114 = vmatpush1.bf16.msra.mxu0 0
  %115 = vmatprep.subr.bf16.mxu0 0
  %116 = vmatpush1.bf16.msra.mxu0 0
  %117 = vmatprep.subr.bf16.mxu0 0
  %118 = vmatpush1.bf16.msra.mxu0 0
  %119 = vmatprep.subr.bf16.mxu0 0
  %120 = vmatpush1.bf16.msra.mxu0 0
  %121 = vmatprep.subr.bf16.mxu0 0
  %122 = vmatpush1.bf16.msra.mxu0 0
  %123 = vmatprep.subr.bf16.mxu0 0
  %124 = vmatpush1.bf16.msra.mxu0 0
  %125 = vmatprep.subr.bf16.mxu0 0
  %126 = vmatpush1.bf16.msra.mxu0 0
  %127 = vmatprep.subr.bf16.mxu0 0
  %128 = vmatpush1.bf16.msra.mxu0 0
  %129 = vmatprep.subr.bf16.mxu0 0
  %130 = vmatpush1.bf16.msra.mxu0 0
  %131 = vmatprep.mubr.bf16.mxu0 0
  %132 = vmatmul.mubr.bf16.gmra.mrb[0].mxu0 %v97
  %v133 = vpop.f32.mrb[0].mxu0
  %v134 = vadd.f32 %v82, %v133
  %v135 = vpop.f32.mrb[0].mxu0
  %v136 = vpop.f32.mrb[0].mxu0
  %v137 = vadd.f32 %v82, %v136
  %v138 = vpop.f32.mrb[0].mxu0
  %139 = vdwg.mxu0
  %v140 = vmul.f32 %v134, 0.5
  %v141 = vmul.f32 %v137, 0.5
  %v142 = vmul.f32 %v134, 0.70710677
  %v143 = vmul.f32 %v137, 0.70710677
  %v144 = verf.f32.pop %v142
  %v145 = verf.f32.pop %v143
  %v146 = vadd.f32 %v144, 1.0
  %v147 = vadd.f32 %v145, 1.0
  %v148 = vmul.f32 %v140, %v146
  %v149 = vmul.f32 %v141, %v147
  %v150 = vpack.c.bf16 %v149, %v148
  %v152 = vunpack.c.l.b16 %v150
  %v153 = vunpack.c.h.b16 %v150
  %v154 = vpack.c.b16 %v152, %v152
  %v155 = vpack.c.b16 %v153, %v153
  %158 = vst [vmem:[%s5] sm:$0xf] %v154
  %159 = vst [vmem:[%s5 + $0x4] sm:$0x1] %v155
  // Predicated region
  $region22: #{dinov2_forward.27} parent=0 // pred_check
    _
  $region23: #{dinov2_forward.27} parent=0 // pred_check_branch
    %161 = sbr.rel (0) target = $region25
  $region24: #{dinov2_forward.27} parent=0 // pred_region
    _
  $region25: #{dinov2_forward.27} parent=0 // pred_fallthru
    _
  // Predicated region
  $region26: #{dinov2_forward.27} parent=0 // pred_check
    _
  $region27: #{dinov2_forward.27} parent=0 // pred_check_branch
    %163 = sbr.rel (0) target = $region29
  $region28: #{dinov2_forward.27} parent=0 // pred_region
    _
  $region29: #{dinov2_forward.27} parent=0 // pred_fallthru
    _

// kernel: dinov2_forward.45
$region0: #{dinov2_forward.45}
  #allocation0 [shape = 'u32[]', space=smem, size = 0x4, offset = 0x4, fixed_abs, tag = 'smem constant byte address 0x4 - core index']
  #allocation1 [shape = 'u32[144,128]{1,0:T(1,128)}', space=vmem, size = 0x12000, scoped, tag = 'internal scratch']
  %s0 = inlined_call_operand.vmem [shape: bf16[10,32], index: 0, kind: input, shape index: {}]
  %s1 = inlined_call_operand.vmem [shape: f32[1,32], index: 1, kind: input, shape index: {}]
  %s2 = inlined_call_operand.vmem [shape: f32[1,32], index: 2, kind: input, shape index: {}]
  %s3 = inlined_call_operand.vmem [shape: f32[10,32], index: 3, kind: output, shape index: {}]
  %s4 = sld [smem:[#allocation0]]
  $region22: #{dinov2_forward.45} parent=0
    _
  %s6 = ssub.s32 1, %s4
  %s7 = scalar_select 0, %s6, %s4
  // Predicated region
  $region2: #{dinov2_forward.45} parent=0 // pred_check
    _
  $region3: #{dinov2_forward.45} parent=0 // pred_check_branch
    %9 = sbr.rel (0) target = $region5
  $region4: #{dinov2_forward.45} parent=0 // pred_region
    _
  $region5: #{dinov2_forward.45} parent=0 // pred_fallthru
    _
  // Predicated region
  $region6: #{dinov2_forward.45} parent=0 // pred_check
    _
  $region7: #{dinov2_forward.45} parent=0 // pred_check_branch
    %11 = sbr.rel (0) target = $region9
  $region8: #{dinov2_forward.45} parent=0 // pred_region
    _
  $region9: #{dinov2_forward.45} parent=0 // pred_fallthru
    _
  // Predicated region
  $region10: #{dinov2_forward.45} parent=0 // pred_check
    _
  $region11: #{dinov2_forward.45} parent=0 // pred_check_branch
    %13 = sbr.rel (0) target = $region13
  $region12: #{dinov2_forward.45} parent=0 // pred_region
    _
  $region13: #{dinov2_forward.45} parent=0 // pred_fallthru
    _
  %v14 = vld [vmem:[%s0] sm:$0xf]
  %v15 = vld [vmem:[%s0 + $0x4] sm:$0x1]
  %v16 = vunpack.c.l.bf16 %v14
  %v17 = vunpack.c.l.bf16 %v15
  %vm18 = vcmask 261120
  %v19 = vsel %vm18, %v16, 0.0
  %20 = vadd.xlane.f32.xlu0 %v19
  %v21 = vpop.xlane.xlu0 %20
  %vm22 = vcmask 254976
  %v23 = vsel %vm22, %v17, 0.0
  %24 = vadd.xlane.f32.xlu0 %v23
  %v25 = vpop.xlane.xlu0 %24
  %v26 = vrcp.pop 32.0
  %v27 = vmul.f32 %v21, %v26
  %v28 = vmul.f32 %v25, %v26
  %v29 = vsub.f32 %v16, %v27
  %v30 = vsub.f32 %v17, %v28
  %v31 = vmul.f32 %v29, %v29
  %v32 = vmul.f32 %v30, %v30
  %v33 = vsel %vm18, %v31, 0.0
  %34 = vadd.xlane.f32.xlu0 %v33
  %v35 = vpop.xlane.xlu0 %34
  %v36 = vsel %vm22, %v32, 0.0
  %37 = vadd.xlane.f32.xlu0 %v36
  %v38 = vpop.xlane.xlu0 %37
  %v39 = vmul.f32 %v35, %v26
  %v40 = vmul.f32 %v38, %v26
  %v41 = vadd.f32 %v39, 1e-06
  %v42 = vadd.f32 %v40, 1e-06
  %v43 = vrsqrt.pop %v41
  %v44 = vrsqrt.pop %v42
  %v45 = vmul.f32 %v29, %v43
  %v46 = vmul.f32 %v30, %v44
  %v47 = vld [vmem:[%s1] sm:$0x1]
  %v49 = vlaneseq
  %v50 = vshrl.u32 %v49, 7
  %v51 = vsub.s32 0, %v50
  %v52 = vrot.slane %v47, %v51
  %v54 = vmul.f32 %v45, %v52
  %v55 = vmul.f32 %v46, %v52
  %v56 = vld [vmem:[%s2] sm:$0x1]
  %v58 = vlaneseq
  %v59 = vshrl.u32 %v58, 7
  %v60 = vsub.s32 0, %v59
  %v61 = vrot.slane %v56, %v60
  %v63 = vadd.f32 %v54, %v61
  %v64 = vadd.f32 %v55, %v61
  %65 = vst.msk [vmem:[%s3] sm:$0xff] %vm18, %v63
  %66 = vst.msk [vmem:[%s3 + $0x8] sm:$0x3] %vm22, %v64
  // Predicated region
  $region14: #{dinov2_forward.45} parent=0 // pred_check
    _
  $region15: #{dinov2_forward.45} parent=0 // pred_check_branch
    %68 = sbr.rel (0) target = $region17
  $region16: #{dinov2_forward.45} parent=0 // pred_region
    _
  $region17: #{dinov2_forward.45} parent=0 // pred_fallthru
    _
  // Predicated region
  $region18: #{dinov2_forward.45} parent=0 // pred_check
    _
  $region19: #{dinov2_forward.45} parent=0 // pred_check_branch
    %70 = sbr.rel (0) target = $region21
  $region20: #{dinov2_forward.45} parent=0 // pred_region
    _
  $region21: #{dinov2_forward.45} parent=0 // pred_fallthru
    _

// kernel: dinov2_forward.28
$region0: #{dinov2_forward.28}
  #allocation0 [shape = 'u32[]', space=smem, size = 0x4, offset = 0x4, fixed_abs, tag = 'smem constant byte address 0x4 - core index']
  #allocation1 [shape = 'u32[144,128]{1,0:T(1,128)}', space=vmem, size = 0x12000, scoped, tag = 'internal scratch']
  %s0 = inlined_call_operand.vmem [shape: bf16[10,128], index: 0, kind: input, shape index: {}]
  %s1 = inlined_call_operand.vmem [shape: bf16[128,32], index: 1, kind: input, shape index: {}]
  %s2 = inlined_call_operand.vmem [shape: f32[1,32], index: 2, kind: input, shape index: {}]
  %s3 = inlined_call_operand.vmem [shape: bf16[10,32], index: 3, kind: input, shape index: {}]
  %s4 = inlined_call_operand.vmem [shape: f32[1,32], index: 4, kind: input, shape index: {}]
  %s5 = inlined_call_operand.vmem [shape: bf16[10,32], index: 5, kind: output, shape index: {}]
  %s6 = sld [smem:[#allocation0]]
  $region30: #{dinov2_forward.28} parent=0
    _
  %s8 = ssub.s32 1, %s6
  %s9 = scalar_select 0, %s8, %s6
  // Predicated region
  $region2: #{dinov2_forward.28} parent=0 // pred_check
    _
  $region3: #{dinov2_forward.28} parent=0 // pred_check_branch
    %11 = sbr.rel (0) target = $region5
  $region4: #{dinov2_forward.28} parent=0 // pred_region
    _
  $region5: #{dinov2_forward.28} parent=0 // pred_fallthru
    _
  // Predicated region
  $region6: #{dinov2_forward.28} parent=0 // pred_check
    _
  $region7: #{dinov2_forward.28} parent=0 // pred_check_branch
    %13 = sbr.rel (0) target = $region9
  $region8: #{dinov2_forward.28} parent=0 // pred_region
    _
  $region9: #{dinov2_forward.28} parent=0 // pred_fallthru
    _
  // Predicated region
  $region10: #{dinov2_forward.28} parent=0 // pred_check
    _
  $region11: #{dinov2_forward.28} parent=0 // pred_check_branch
    %15 = sbr.rel (0) target = $region13
  $region12: #{dinov2_forward.28} parent=0 // pred_region
    _
  $region13: #{dinov2_forward.28} parent=0 // pred_fallthru
    _
  // Predicated region
  $region14: #{dinov2_forward.28} parent=0 // pred_check
    _
  $region15: #{dinov2_forward.28} parent=0 // pred_check_branch
    %17 = sbr.rel (0) target = $region17
  $region16: #{dinov2_forward.28} parent=0 // pred_region
    _
  $region17: #{dinov2_forward.28} parent=0 // pred_fallthru
    _
  // Predicated region
  $region18: #{dinov2_forward.28} parent=0 // pred_check
    _
  $region19: #{dinov2_forward.28} parent=0 // pred_check_branch
    %19 = sbr.rel (0) target = $region21
  $region20: #{dinov2_forward.28} parent=0 // pred_region
    _
  $region21: #{dinov2_forward.28} parent=0 // pred_fallthru
    _
  %v21 = vld [vmem:[%s0] sm:$0xf]
  %v22 = vld [vmem:[%s0 + $0x4] sm:$0x1]
  %v23 = vld [vmem:[%s1] sm:$0xf]
  %v24 = vld [vmem:[%s1 + $0x4] sm:$0xf]
  %v25 = vld [vmem:[%s1 + $0x8] sm:$0xf]
  %v26 = vld [vmem:[%s1 + $0xc] sm:$0xf]
  %v27 = vld [vmem:[%s1 + $0x10] sm:$0xf]
  %v28 = vld [vmem:[%s1 + $0x14] sm:$0xf]
  %v29 = vld [vmem:[%s1 + $0x18] sm:$0xf]
  %v30 = vld [vmem:[%s1 + $0x1c] sm:$0xf]
  %v31 = vld [vmem:[%s1 + $0x20] sm:$0xf]
  %v32 = vld [vmem:[%s1 + $0x24] sm:$0xf]
  %v33 = vld [vmem:[%s1 + $0x28] sm:$0xf]
  %v34 = vld [vmem:[%s1 + $0x2c] sm:$0xf]
  %v35 = vld [vmem:[%s1 + $0x30] sm:$0xf]
  %v36 = vld [vmem:[%s1 + $0x34] sm:$0xf]
  %v37 = vld [vmem:[%s1 + $0x38] sm:$0xf]
  %v38 = vld [vmem:[%s1 + $0x3c] sm:$0xf]
  %v39 = vld [vmem:[%s2] sm:$0x1]
  %v41 = vlaneseq
  %v42 = vshrl.u32 %v41, 7
  %v43 = vsub.s32 0, %v42
  %v44 = vrot.slane %v39, %v43
  %v48 = vunpack.c.l.b16 %v21
  %v49 = vunpack.c.l.b16 %v22
  %v50 = vpack.c.b16 %v49, %v48
  %v68 = vunpack.c.l.b16 %v23
  %v69 = vunpack.c.l.b16 %v24
  %v70 = vunpack.c.l.b16 %v25
  %v71 = vunpack.c.l.b16 %v26
  %v72 = vunpack.c.l.b16 %v27
  %v73 = vunpack.c.l.b16 %v28
  %v74 = vunpack.c.l.b16 %v29
  %v75 = vunpack.c.l.b16 %v30
  %v76 = vunpack.c.l.b16 %v31
  %v77 = vunpack.c.l.b16 %v32
  %v78 = vunpack.c.l.b16 %v33
  %v79 = vunpack.c.l.b16 %v34
  %v80 = vunpack.c.l.b16 %v35
  %v81 = vunpack.c.l.b16 %v36
  %v82 = vunpack.c.l.b16 %v37
  %v83 = vunpack.c.l.b16 %v38
  %v84 = vpack.c.b16 %v69, %v68
  %v85 = vpack.c.b16 %v71, %v70
  %v86 = vpack.c.b16 %v73, %v72
  %v87 = vpack.c.b16 %v75, %v74
  %v88 = vpack.c.b16 %v77, %v76
  %v89 = vpack.c.b16 %v79, %v78
  %v90 = vpack.c.b16 %v81, %v80
  %v91 = vpack.c.b16 %v83, %v82
  %100 = vmatprep.subr.bf16.mxu0 0
  %101 = vmatpush1.bf16.msra.mxu0 %v84
  %102 = vmatprep.subr.bf16.mxu0 0
  %103 = vmatpush1.bf16.msra.mxu0 %v85
  %104 = vmatprep.subr.bf16.mxu0 0
  %105 = vmatpush1.bf16.msra.mxu0 %v86
  %106 = vmatprep.subr.bf16.mxu0 0
  %107 = vmatpush1.bf16.msra.mxu0 %v87
  %108 = vmatprep.subr.bf16.mxu0 0
  %109 = vmatpush1.bf16.msra.mxu0 %v88
  %110 = vmatprep.subr.bf16.mxu0 0
  %111 = vmatpush1.bf16.msra.mxu0 %v89
  %112 = vmatprep.subr.bf16.mxu0 0
  %113 = vmatpush1.bf16.msra.mxu0 %v90
  %114 = vmatprep.subr.bf16.mxu0 0
  %115 = vmatpush1.bf16.msra.mxu0 %v91
  %116 = vmatprep.subr.bf16.mxu0 0
  %117 = vmatpush1.bf16.msra.mxu0 0
  %118 = vmatprep.subr.bf16.mxu0 0
  %119 = vmatpush1.bf16.msra.mxu0 0
  %120 = vmatprep.subr.bf16.mxu0 0
  %121 = vmatpush1.bf16.msra.mxu0 0
  %122 = vmatprep.subr.bf16.mxu0 0
  %123 = vmatpush1.bf16.msra.mxu0 0
  %124 = vmatprep.subr.bf16.mxu0 0
  %125 = vmatpush1.bf16.msra.mxu0 0
  %126 = vmatprep.subr.bf16.mxu0 0
  %127 = vmatpush1.bf16.msra.mxu0 0
  %128 = vmatprep.subr.bf16.mxu0 0
  %129 = vmatpush1.bf16.msra.mxu0 0
  %130 = vmatprep.subr.bf16.mxu0 0
  %131 = vmatpush1.bf16.msra.mxu0 0
  %132 = vmatprep.mubr.bf16.mxu0 0
  %133 = vmatmul.mubr.bf16.gmra.mrb[0].mxu0 %v50
  %v134 = vpop.f32.mrb[0].mxu0
  %v135 = vadd.f32 %v44, %v134
  %v136 = vpop.f32.mrb[0].mxu0
  %v137 = vpop.f32.mrb[0].mxu0
  %v138 = vadd.f32 %v44, %v137
  %v139 = vpop.f32.mrb[0].mxu0
  %140 = vdwg.mxu0
  %v141 = vld [vmem:[%s3] sm:$0xf]
  %v142 = vld [vmem:[%s3 + $0x4] sm:$0x1]
  %v143 = vunpack.c.l.bf16 %v141
  %v144 = vunpack.c.l.bf16 %v142
  %v145 = vld [vmem:[%s4] sm:$0x1]
  %v147 = vlaneseq
  %v148 = vshrl.u32 %v147, 7
  %v149 = vsub.s32 0, %v148
  %v150 = vrot.slane %v145, %v149
  %v152 = vmul.f32 %v150, %v135
  %v153 = vmul.f32 %v150, %v138
  %v154 = vadd.f32 %v143, %v152
  %v155 = vadd.f32 %v144, %v153
  %v156 = vpack.c.bf16 %v155, %v154
  %v158 = vunpack.c.l.b16 %v156
  %v159 = vunpack.c.h.b16 %v156
  %v160 = vpack.c.b16 %v158, %v158
  %v161 = vpack.c.b16 %v159, %v159
  %vm164 = vcmask 257024
  %165 = vst.msk [vmem:[%s5] sm:$0xf] %vm164, %v160
  %vm166 = vcmask 253952
  %167 = vst.msk [vmem:[%s5 + $0x4] sm:$0x1] %vm166, %v161
  // Predicated region
  $region22: #{dinov2_forward.28} parent=0 // pred_check
    _
  $region23: #{dinov2_forward.28} parent=0 // pred_check_branch
    %169 = sbr.rel (0) target = $region25
  $region24: #{dinov2_forward.28} parent=0 // pred_region
    _
  $region25: #{dinov2_forward.28} parent=0 // pred_fallthru
    _
  // Predicated region
  $region26: #{dinov2_forward.28} parent=0 // pred_check
    _
  $region27: #{dinov2_forward.28} parent=0 // pred_check_branch
    %171 = sbr.rel (0) target = $region29
  $region28: #{dinov2_forward.28} parent=0 // pred_region
    _
  $region29: #{dinov2_forward.28} parent=0 // pred_fallthru
    _

</llo_original>
